<compile_context>
chip_gen: v5e
topology: v5e:2x2
jax: 0.10.0
libtpu: 0.0.40
codegen_flags: <defaults>
</compile_context>

<pallas_src>
import functools

import numpy as np
import jax
import jax.numpy as jnp
from jax.experimental import pallas as pl
from jax.experimental.pallas import tpu as pltpu

BN_EPS = 1e-5
_LANE = 128


def _round_up(x, m):
    return (x + m - 1) // m * m


def _vmem_spec():
    return pl.BlockSpec(memory_space=pltpu.MemorySpace.VMEM)


# --------------------------- the single fused kernel ---------------------------------


def _prediction_kernel(*refs, nblocks, n_value_layers, n_policy_layers,
                       batch, height, width, cv, cp):
    (x_ref, mask_ref, w1_ref, g1_ref, b1_ref, w2_ref, g2_ref, b2_ref,
     wh_ref, bh_ref) = refs[:10]
    pos = 10
    value_wb = refs[pos:pos + 2 * n_value_layers]
    pos += 2 * n_value_layers
    policy_wb = refs[pos:pos + 2 * n_policy_layers]
    pos += 2 * n_policy_layers
    policy_ref, value_ref, head_scr = refs[pos], refs[pos + 1], refs[pos + 2]

    c, m = x_ref.shape
    hw = height * width
    inv_m = 1.0 / m

    mask9 = mask_ref[...]                       # (9C, M) boundary mask, hoisted/constant
    tap_offsets = [dy * width + dx for dy in (-1, 0, 1) for dx in (-1, 0, 1)]

    def conv3x3(a, w):
        # a: (C, M) f32 activation, w: (C, 9C) bf16 packed weight.
        # Single fused tap matmul (depth 9*C) instead of 9 depth-C dots; taps built
        # with XLU lane rotates, masked once, cast to bf16 once.
        parts = [a if off == 0 else pltpu.roll(a, shift=(-off) % m, axis=1)
                 for off in tap_offsets]
        taps = (jnp.concatenate(parts, axis=0) * mask9).astype(jnp.bfloat16)
        return jnp.dot(w, taps, preferred_element_type=jnp.float32)

    def batchnorm(y, g, b):
        # Single-pass training-mode batch stats over the M = N*H*W lane axis.
        s1 = jnp.sum(y, axis=1, keepdims=True)
        s2 = jnp.sum(y * y, axis=1, keepdims=True)
        mean = s1 * inv_m
        var = s2 * inv_m - mean * mean
        scale = g * jax.lax.rsqrt(var + BN_EPS)
        return (y - mean) * scale + b

    a = x_ref[...]                               # (C, M) f32, stays register/VMEM resident
    for blk in range(nblocks):
        h1 = jnp.maximum(batchnorm(conv3x3(a, w1_ref[blk]),
                                   g1_ref[blk], b1_ref[blk]), 0.0)
        h2 = batchnorm(conv3x3(h1, w2_ref[blk]), g2_ref[blk], b2_ref[blk])
        a = jnp.maximum(h2 + a, 0.0)

    # Fused 1x1 value+policy heads in one matmul; staged through a tiny VMEM scratch so
    # the NCHW `.view(-1, C*H*W)` flatten below is plain static ref slicing.
    head_scr[...] = (jnp.dot(wh_ref[...], a.astype(jnp.bfloat16),
                             preferred_element_type=jnp.float32) + bh_ref[...])

    def flatten_head(row0, nch):
        # (nch, N*HW) head rows -> (N, nch*HW) in torch NCHW flatten order.
        rows = []
        for b_i in range(batch):
            pieces = [head_scr[row0 + ch:row0 + ch + 1, b_i * hw:(b_i + 1) * hw]
                      for ch in range(nch)]
            rows.append(jnp.concatenate(pieces, axis=1))
        return jnp.concatenate(rows, axis=0)

    def mlp(x, wb, n_layers):
        for i in range(n_layers):
            w = wb[2 * i][...]
            b = wb[2 * i + 1][...]
            y = jnp.dot(x.astype(jnp.bfloat16), w,
                        preferred_element_type=jnp.float32) + b
            if i < n_layers - 1:       # hidden layers: ELU(alpha=1); last: Identity
                # TODO(synk): switch to jnp.expm1 once confirmed in the Mosaic lowering set.
                y = jnp.where(y > 0.0, y, jnp.exp(jnp.minimum(y, 0.0)) - 1.0)
            x = y
        return x

    value_ref[...] = mlp(flatten_head(0, cv), value_wb, n_value_layers)
    policy_ref[...] = mlp(flatten_head(cv, cp), policy_wb, n_policy_layers)


# ------------------------------- call wrapper ----------------------------------------


def _conv_tap_mask(batch, height, width, channels):
    """(9C, M) f32 validity mask for the 9 conv taps (built host-side, passed as input)."""
    m = batch * height * width
    cols = np.arange(m)
    hh = (cols // width) % height
    ww = cols % width
    blocks = []
    for dy in (-1, 0, 1):
        for dx in (-1, 0, 1):
            ok = ((hh + dy >= 0) & (hh + dy < height) &
                  (ww + dx >= 0) & (ww + dx < width)).astype(np.float32)
            blocks.append(np.repeat(ok[None, :], channels, axis=0))
    return jnp.asarray(np.concatenate(blocks, axis=0))


def _prediction_call(x_t, params, batch, height, width):
    tw = params["tower"]
    nblocks = tw["w1"].shape[0]
    cv, cp = params["cv"], params["cp"]
    fc_value, fc_policy = params["fc_value"], params["fc_policy"]

    c, m = x_t.shape
    mask9 = _conv_tap_mask(batch, height, width, c)

    args = [x_t, mask9, tw["w1"], tw["g1"], tw["b1"], tw["w2"], tw["g2"], tw["b2"],
            params["w_head"], params["b_head"]]
    for wt, bs in fc_value:
        args += [wt, bs]
    for wt, bs in fc_policy:
        args += [wt, bs]

    a_pad = fc_policy[-1][0].shape[1]        # lane-padded action dim
    s_pad = fc_value[-1][0].shape[1]         # lane-padded support dim
    chead = params["w_head"].shape[0]

    flops = (nblocks * 2 * 2 * c * (9 * c) * m
             + 2 * chead * c * m
             + sum(2 * batch * wt.shape[0] * wt.shape[1] for wt, _ in fc_value + fc_policy))
    trans = (4 * nblocks * c
             + sum(batch * wt.shape[1] for wt, _ in fc_value[:-1] + fc_policy[:-1]))
    bytes_accessed = (sum(int(a.size) * a.dtype.itemsize for a in args)
                      + batch * (a_pad + s_pad) * 4)

    kernel = functools.partial(
        _prediction_kernel, nblocks=nblocks, n_value_layers=len(fc_value),
        n_policy_layers=len(fc_policy), batch=batch, height=height, width=width,
        cv=cv, cp=cp)

    return pl.pallas_call(
        kernel,
        out_shape=(jax.ShapeDtypeStruct((batch, a_pad), jnp.float32),   # policy (padded)
                   jax.ShapeDtypeStruct((batch, s_pad), jnp.float32)),  # value (padded)
        in_specs=[_vmem_spec() for _ in args],
        out_specs=(_vmem_spec(), _vmem_spec()),
        scratch_shapes=[pltpu.VMEM((chead, m), jnp.float32)],
        compiler_params=pltpu.CompilerParams(vmem_limit_bytes=32 * 1024 * 1024),
        cost_estimate=pl.CostEstimate(flops=int(flops), transcendentals=int(trans),
                                      bytes_accessed=int(bytes_accessed)),
    )(*args)


def prediction_network_forward(x_nchw, params):
    n, c, h, w = x_nchw.shape
    # NCHW -> channels on sublanes, flat N*H*W on the lane axis (lane-dense for C << 128).
    # TODO(synk): for N*H*W not a multiple of 128, tile M with a two-pass BatchNorm.
    x_t = jnp.transpose(x_nchw, (1, 0, 2, 3)).reshape(c, n * h * w).astype(jnp.float32)
    policy_pad, value_pad = _prediction_call(x_t, params, n, h, w)
    policy = policy_pad[:, :params["action_space_size"]]
    value = value_pad[:, :params["full_support_size"]]
    return policy, value


# --------------------------- parameter construction ----------------------------------


def _uniform(key, shape, bound):
    return jax.random.uniform(key, shape, jnp.float32, minval=-bound, maxval=bound)


def _make_mlp(key, in_size, hidden_sizes, out_size):
    """Linear weights stored (in, out) bf16, biases (1, out) f32; the last layer's
    out dim is zero-padded to a multiple of 128 lanes (unmasked stores in-kernel)."""
    sizes = [in_size] + list(hidden_sizes) + [out_size]
    layers = []
    for i in range(len(sizes) - 1):
        key, kw, kb = jax.random.split(key, 3)
        bound = 1.0 / (sizes[i] ** 0.5)
        w = _uniform(kw, (sizes[i], sizes[i + 1]), bound)
        b = _uniform(kb, (sizes[i + 1],), bound)
        if i == len(sizes) - 2:
            out_pad = _round_up(sizes[i + 1], _LANE)
            w = jnp.zeros((sizes[i], out_pad), jnp.float32).at[:, :sizes[i + 1]].set(w)
            b = jnp.zeros((out_pad,), jnp.float32).at[:sizes[i + 1]].set(b)
        layers.append((w.astype(jnp.bfloat16), b.reshape(1, -1).astype(jnp.float32)))
    return key, layers


def init_params(key, *, num_blocks, num_channels, reduced_channels_value,
                reduced_channels_policy, fc_value_layers, fc_policy_layers,
                full_support_size, action_space_size, height, width):
    c = num_channels
    hw = height * width
    conv_bound = 1.0 / ((9 * c) ** 0.5)

    w1, w2 = [], []
    for _ in range(num_blocks):
        key, k1, k2 = jax.random.split(key, 3)
        # packed (C_out, 9*C_in): column t*C_in + ci with t = (dy+1)*3 + (dx+1)
        w1.append(_uniform(k1, (c, 9 * c), conv_bound))
        w2.append(_uniform(k2, (c, 9 * c), conv_bound))
    tower = {
        "w1": jnp.stack(w1).astype(jnp.bfloat16),        # (nblocks, C, 9C)
        "w2": jnp.stack(w2).astype(jnp.bfloat16),
        "g1": jnp.ones((num_blocks, c, 1), jnp.float32),
        "b1": jnp.zeros((num_blocks, c, 1), jnp.float32),
        "g2": jnp.ones((num_blocks, c, 1), jnp.float32),
        "b2": jnp.zeros((num_blocks, c, 1), jnp.float32),
    }

    # Fused 1x1 heads: rows [0:cv] = value conv, rows [cv:cv+cp] = policy conv,
    # sublane-padded to a multiple of 8.
    cv, cp = reduced_channels_value, reduced_channels_policy
    chead = _round_up(cv + cp, 8)
    key, kv, kvb, kp, kpb = jax.random.split(key, 5)
    bnd = 1.0 / (c ** 0.5)
    w_head = jnp.zeros((chead, c), jnp.float32)
    w_head = w_head.at[:cv].set(_uniform(kv, (cv, c), bnd))
    w_head = w_head.at[cv:cv + cp].set(_uniform(kp, (cp, c), bnd))
    b_head = jnp.zeros((chead, 1), jnp.float32)
    b_head = b_head.at[:cv, 0].set(_uniform(kvb, (cv,), bnd))
    b_head = b_head.at[cv:cv + cp, 0].set(_uniform(kpb, (cp,), bnd))

    key, fc_value = _make_mlp(key, cv * hw, fc_value_layers, full_support_size)
    key, fc_policy = _make_mlp(key, cp * hw, fc_policy_layers, action_space_size)

    return {
        "tower": tower,
        "w_head": w_head.astype(jnp.bfloat16),
        "b_head": b_head,
        "fc_value": fc_value,
        "fc_policy": fc_policy,
        "cv": cv,
        "cp": cp,
        "action_space_size": action_space_size,
        "full_support_size": full_support_size,
    }


# ------------------------- pure-JAX reference (f32) ----------------------------------


def _reference_forward(x_nchw, params):
    n, c, h, w = x_nchw.shape
    tw = params["tower"]
    nblocks = tw["w1"].shape[0]

    def conv(x, wp):
        w4 = wp.astype(jnp.float32).reshape(c, 3, 3, c).transpose(0, 3, 1, 2)
        return jax.lax.conv_general_dilated(
            x, w4, window_strides=(1, 1), padding="SAME",
            dimension_numbers=("NCHW", "OIHW", "NCHW"))

    def bn(y, g, b):
        mean = jnp.mean(y, axis=(0, 2, 3), keepdims=True)
        var = jnp.var(y, axis=(0, 2, 3), keepdims=True)
        return (g.reshape(1, c, 1, 1) * (y - mean) * jax.lax.rsqrt(var + BN_EPS)
                + b.reshape(1, c, 1, 1))

    a = x_nchw.astype(jnp.float32)
    for i in range(nblocks):
        h1 = jax.nn.relu(bn(conv(a, tw["w1"][i]), tw["g1"][i], tw["b1"][i]))
        h2 = bn(conv(h1, tw["w2"][i]), tw["g2"][i], tw["b2"][i])
        a = jax.nn.relu(h2 + a)

    wh = params["w_head"].astype(jnp.float32)
    head = jnp.einsum("oc,nchw->nohw", wh, a) + params["b_head"].reshape(1, -1, 1, 1)
    cv, cp = params["cv"], params["cp"]
    v = head[:, :cv].reshape(n, cv * h * w)
    p = head[:, cv:cv + cp].reshape(n, cp * h * w)

    def mlp(x, wbs):
        for i, (wt, bs) in enumerate(wbs):
            y = x @ wt.astype(jnp.float32) + bs
            if i < len(wbs) - 1:
                y = jnp.where(y > 0.0, y, jnp.exp(jnp.minimum(y, 0.0)) - 1.0)
            x = y
        return x

    policy = mlp(p, params["fc_policy"])[:, :params["action_space_size"]]
    value = mlp(v, params["fc_value"])[:, :params["full_support_size"]]
    return policy, value


# ------------------------------------- main ------------------------------------------


if __name__ == "__main__":
    N, C, H, W = 2, 8, 8, 8
    num_blocks = 2
    reduced_channels_value = 2
    reduced_channels_policy = 4
    fc_value_layers = [32]
    fc_policy_layers = [32]
    full_support_size = 21
    action_space_size = 6

    key = jax.random.PRNGKey(0)
    key, kx = jax.random.split(key)
    x = jax.random.normal(kx, (N, C, H, W), jnp.float32)    # NCHW, like PyTorch

    params = init_params(
        key,
        num_blocks=num_blocks,
        num_channels=C,
        reduced_channels_value=reduced_channels_value,
        reduced_channels_policy=reduced_channels_policy,
        fc_value_layers=fc_value_layers,
        fc_policy_layers=fc_policy_layers,
        full_support_size=full_support_size,
        action_space_size=action_space_size,
        height=H,
        width=W,
    )

    fwd = jax.jit(lambda xx: prediction_network_forward(xx, params))
    policy, value = fwd(x)
    jax.block_until_ready((policy, value))

    assert policy.shape == (N, action_space_size), policy.shape
    assert value.shape == (N, full_support_size), value.shape
    assert bool(jnp.all(jnp.isfinite(policy))) and bool(jnp.all(jnp.isfinite(value)))

    # Numerical check against a pure-JAX f32 reference (kernel uses bf16 MXU operands).
    ref_policy, ref_value = _reference_forward(x, params)
    err_p = float(jnp.max(jnp.abs(policy - ref_policy)))
    err_v = float(jnp.max(jnp.abs(value - ref_value)))
    assert err_p < 5e-2 and err_v < 5e-2, (err_p, err_v)

    print("KERNEL_OK")
</pallas_src>

<mosaic_0001>
module attributes {stable_mosaic.version = 11 : i64} {
  func.func @_prediction_kernel(%arg0: memref<8x128xf32, #tpu.memory_space<vmem>>, %arg1: memref<72x128xf32, #tpu.memory_space<vmem>>, %arg2: memref<2x8x72xbf16, #tpu.memory_space<vmem>>, %arg3: memref<2x8x1xf32, #tpu.memory_space<vmem>>, %arg4: memref<2x8x1xf32, #tpu.memory_space<vmem>>, %arg5: memref<2x8x72xbf16, #tpu.memory_space<vmem>>, %arg6: memref<2x8x1xf32, #tpu.memory_space<vmem>>, %arg7: memref<2x8x1xf32, #tpu.memory_space<vmem>>, %arg8: memref<8x8xbf16, #tpu.memory_space<vmem>>, %arg9: memref<8x1xf32, #tpu.memory_space<vmem>>, %arg10: memref<128x32xbf16, #tpu.memory_space<vmem>>, %arg11: memref<1x32xf32, #tpu.memory_space<vmem>>, %arg12: memref<32x128xbf16, #tpu.memory_space<vmem>>, %arg13: memref<1x128xf32, #tpu.memory_space<vmem>>, %arg14: memref<256x32xbf16, #tpu.memory_space<vmem>>, %arg15: memref<1x32xf32, #tpu.memory_space<vmem>>, %arg16: memref<32x128xbf16, #tpu.memory_space<vmem>>, %arg17: memref<1x128xf32, #tpu.memory_space<vmem>>, %arg18: memref<2x128xf32, #tpu.memory_space<vmem>>, %arg19: memref<2x128xf32, #tpu.memory_space<vmem>>, %arg20: memref<8x128xf32, #tpu.memory_space<vmem>>) attributes {dimension_semantics = [], scalar_prefetch = 0 : i64, scratch_operands = 1 : i64, tpu.core_type = #tpu.core_type<tc>} {
    %c0 = arith.constant 0 : index
    %c0_0 = arith.constant 0 : index
    %0 = vector.load %arg1[%c0, %c0_0] : memref<72x128xf32, #tpu.memory_space<vmem>>, vector<72x128xf32>
    %c0_1 = arith.constant 0 : index
    %c0_2 = arith.constant 0 : index
    %1 = vector.load %arg0[%c0_1, %c0_2] : memref<8x128xf32, #tpu.memory_space<vmem>>, vector<8x128xf32>
    %c0_3 = arith.constant 0 : index
    %c0_4 = arith.constant 0 : index
    %c0_5 = arith.constant 0 : index
    %2 = vector.load %arg2[%c0_3, %c0_4, %c0_5] : memref<2x8x72xbf16, #tpu.memory_space<vmem>>, vector<1x8x72xbf16>
    %3 = vector.shape_cast %2 : vector<1x8x72xbf16> to vector<8x72xbf16>
    %c9_i32 = arith.constant 9 : i32
    %4 = tpu.dynamic_rotate %1 by %c9_i32 dim 1 : vector<8x128xf32>, i32 -> vector<8x128xf32>
    %c8_i32 = arith.constant 8 : i32
    %5 = tpu.dynamic_rotate %1 by %c8_i32 dim 1 : vector<8x128xf32>, i32 -> vector<8x128xf32>
    %c7_i32 = arith.constant 7 : i32
    %6 = tpu.dynamic_rotate %1 by %c7_i32 dim 1 : vector<8x128xf32>, i32 -> vector<8x128xf32>
    %c1_i32 = arith.constant 1 : i32
    %7 = tpu.dynamic_rotate %1 by %c1_i32 dim 1 : vector<8x128xf32>, i32 -> vector<8x128xf32>
    %c127_i32 = arith.constant 127 : i32
    %8 = tpu.dynamic_rotate %1 by %c127_i32 dim 1 : vector<8x128xf32>, i32 -> vector<8x128xf32>
    %c121_i32 = arith.constant 121 : i32
    %9 = tpu.dynamic_rotate %1 by %c121_i32 dim 1 : vector<8x128xf32>, i32 -> vector<8x128xf32>
    %c120_i32 = arith.constant 120 : i32
    %10 = tpu.dynamic_rotate %1 by %c120_i32 dim 1 : vector<8x128xf32>, i32 -> vector<8x128xf32>
    %c119_i32 = arith.constant 119 : i32
    %11 = tpu.dynamic_rotate %1 by %c119_i32 dim 1 : vector<8x128xf32>, i32 -> vector<8x128xf32>
    %12 = tpu.concatenate %4, %5, %6, %7, %1, %8, %9, %10, %11 in 0 : vector<8x128xf32>, vector<8x128xf32>, vector<8x128xf32>, vector<8x128xf32>, vector<8x128xf32>, vector<8x128xf32>, vector<8x128xf32>, vector<8x128xf32>, vector<8x128xf32> -> vector<72x128xf32>
    %13 = arith.mulf %12, %0 : vector<72x128xf32>
    %14 = arith.truncf %13 : vector<72x128xf32> to vector<72x128xbf16>
    %cst = arith.constant dense<0.000000e+00> : vector<8x128xf32>
    %15 = tpu.matmul %3, %14, %cst {dimension_numbers = #tpu.dot_dimension_numbers<[1], [0], [0], [1], [0, 0, 1, 1], [], []>} : vector<8x72xbf16>, vector<72x128xbf16>, vector<8x128xf32> -> vector<8x128xf32>
    %c0_6 = arith.constant 0 : index
    %c0_7 = arith.constant 0 : index
    %c0_8 = arith.constant 0 : index
    %16 = vector.load %arg3[%c0_6, %c0_7, %c0_8] : memref<2x8x1xf32, #tpu.memory_space<vmem>>, vector<1x8x1xf32>
    %17 = vector.shape_cast %16 : vector<1x8x1xf32> to vector<8x1xf32>
    %c0_9 = arith.constant 0 : index
    %c0_10 = arith.constant 0 : index
    %c0_11 = arith.constant 0 : index
    %18 = vector.load %arg4[%c0_9, %c0_10, %c0_11] : memref<2x8x1xf32, #tpu.memory_space<vmem>>, vector<1x8x1xf32>
    %19 = vector.shape_cast %18 : vector<1x8x1xf32> to vector<8x1xf32>
    %cst_12 = arith.constant dense<0.000000e+00> : vector<8xf32>
    %20 = vector.multi_reduction <add>, %15, %cst_12 [1] : vector<8x128xf32> to vector<8xf32>
    %21 = vector.shape_cast %20 : vector<8xf32> to vector<8x1xf32>
    %22 = arith.mulf %15, %15 : vector<8x128xf32>
    %cst_13 = arith.constant dense<0.000000e+00> : vector<8xf32>
    %23 = vector.multi_reduction <add>, %22, %cst_13 [1] : vector<8x128xf32> to vector<8xf32>
    %24 = vector.shape_cast %23 : vector<8xf32> to vector<8x1xf32>
    %cst_14 = arith.constant 7.812500e-03 : f32
    %25 = vector.broadcast %cst_14 : f32 to vector<8x1xf32>
    %26 = arith.mulf %21, %25 : vector<8x1xf32>
    %cst_15 = arith.constant 7.812500e-03 : f32
    %27 = vector.broadcast %cst_15 : f32 to vector<8x1xf32>
    %28 = arith.mulf %24, %27 : vector<8x1xf32>
    %29 = arith.mulf %26, %26 : vector<8x1xf32>
    %30 = arith.subf %28, %29 : vector<8x1xf32>
    %cst_16 = arith.constant 9.99999974E-6 : f32
    %31 = vector.broadcast %cst_16 : f32 to vector<8x1xf32>
    %32 = arith.addf %30, %31 : vector<8x1xf32>
    %33 = math.rsqrt %32 : vector<8x1xf32>
    %34 = arith.mulf %17, %33 : vector<8x1xf32>
    %35 = vector.broadcast %26 : vector<8x1xf32> to vector<8x128xf32>
    %36 = arith.subf %15, %35 : vector<8x128xf32>
    %37 = vector.broadcast %34 : vector<8x1xf32> to vector<8x128xf32>
    %38 = arith.mulf %36, %37 : vector<8x128xf32>
    %39 = vector.broadcast %19 : vector<8x1xf32> to vector<8x128xf32>
    %40 = arith.addf %38, %39 : vector<8x128xf32>
    %cst_17 = arith.constant 0.000000e+00 : f32
    %41 = vector.broadcast %cst_17 : f32 to vector<8x128xf32>
    %42 = arith.maximumf %40, %41 : vector<8x128xf32>
    %c0_18 = arith.constant 0 : index
    %c0_19 = arith.constant 0 : index
    %c0_20 = arith.constant 0 : index
    %43 = vector.load %arg5[%c0_18, %c0_19, %c0_20] : memref<2x8x72xbf16, #tpu.memory_space<vmem>>, vector<1x8x72xbf16>
    %44 = vector.shape_cast %43 : vector<1x8x72xbf16> to vector<8x72xbf16>
    %c9_i32_21 = arith.constant 9 : i32
    %45 = tpu.dynamic_rotate %42 by %c9_i32_21 dim 1 : vector<8x128xf32>, i32 -> vector<8x128xf32>
    %c8_i32_22 = arith.constant 8 : i32
    %46 = tpu.dynamic_rotate %42 by %c8_i32_22 dim 1 : vector<8x128xf32>, i32 -> vector<8x128xf32>
    %c7_i32_23 = arith.constant 7 : i32
    %47 = tpu.dynamic_rotate %42 by %c7_i32_23 dim 1 : vector<8x128xf32>, i32 -> vector<8x128xf32>
    %c1_i32_24 = arith.constant 1 : i32
    %48 = tpu.dynamic_rotate %42 by %c1_i32_24 dim 1 : vector<8x128xf32>, i32 -> vector<8x128xf32>
    %c127_i32_25 = arith.constant 127 : i32
    %49 = tpu.dynamic_rotate %42 by %c127_i32_25 dim 1 : vector<8x128xf32>, i32 -> vector<8x128xf32>
    %c121_i32_26 = arith.constant 121 : i32
    %50 = tpu.dynamic_rotate %42 by %c121_i32_26 dim 1 : vector<8x128xf32>, i32 -> vector<8x128xf32>
    %c120_i32_27 = arith.constant 120 : i32
    %51 = tpu.dynamic_rotate %42 by %c120_i32_27 dim 1 : vector<8x128xf32>, i32 -> vector<8x128xf32>
    %c119_i32_28 = arith.constant 119 : i32
    %52 = tpu.dynamic_rotate %42 by %c119_i32_28 dim 1 : vector<8x128xf32>, i32 -> vector<8x128xf32>
    %53 = tpu.concatenate %45, %46, %47, %48, %42, %49, %50, %51, %52 in 0 : vector<8x128xf32>, vector<8x128xf32>, vector<8x128xf32>, vector<8x128xf32>, vector<8x128xf32>, vector<8x128xf32>, vector<8x128xf32>, vector<8x128xf32>, vector<8x128xf32> -> vector<72x128xf32>
    %54 = arith.mulf %53, %0 : vector<72x128xf32>
    %55 = arith.truncf %54 : vector<72x128xf32> to vector<72x128xbf16>
    %cst_29 = arith.constant dense<0.000000e+00> : vector<8x128xf32>
    %56 = tpu.matmul %44, %55, %cst_29 {dimension_numbers = #tpu.dot_dimension_numbers<[1], [0], [0], [1], [0, 0, 1, 1], [], []>} : vector<8x72xbf16>, vector<72x128xbf16>, vector<8x128xf32> -> vector<8x128xf32>
    %c0_30 = arith.constant 0 : index
    %c0_31 = arith.constant 0 : index
    %c0_32 = arith.constant 0 : index
    %57 = vector.load %arg6[%c0_30, %c0_31, %c0_32] : memref<2x8x1xf32, #tpu.memory_space<vmem>>, vector<1x8x1xf32>
    %58 = vector.shape_cast %57 : vector<1x8x1xf32> to vector<8x1xf32>
    %c0_33 = arith.constant 0 : index
    %c0_34 = arith.constant 0 : index
    %c0_35 = arith.constant 0 : index
    %59 = vector.load %arg7[%c0_33, %c0_34, %c0_35] : memref<2x8x1xf32, #tpu.memory_space<vmem>>, vector<1x8x1xf32>
    %60 = vector.shape_cast %59 : vector<1x8x1xf32> to vector<8x1xf32>
    %cst_36 = arith.constant dense<0.000000e+00> : vector<8xf32>
    %61 = vector.multi_reduction <add>, %56, %cst_36 [1] : vector<8x128xf32> to vector<8xf32>
    %62 = vector.shape_cast %61 : vector<8xf32> to vector<8x1xf32>
    %63 = arith.mulf %56, %56 : vector<8x128xf32>
    %cst_37 = arith.constant dense<0.000000e+00> : vector<8xf32>
    %64 = vector.multi_reduction <add>, %63, %cst_37 [1] : vector<8x128xf32> to vector<8xf32>
    %65 = vector.shape_cast %64 : vector<8xf32> to vector<8x1xf32>
    %cst_38 = arith.constant 7.812500e-03 : f32
    %66 = vector.broadcast %cst_38 : f32 to vector<8x1xf32>
    %67 = arith.mulf %62, %66 : vector<8x1xf32>
    %cst_39 = arith.constant 7.812500e-03 : f32
    %68 = vector.broadcast %cst_39 : f32 to vector<8x1xf32>
    %69 = arith.mulf %65, %68 : vector<8x1xf32>
    %70 = arith.mulf %67, %67 : vector<8x1xf32>
    %71 = arith.subf %69, %70 : vector<8x1xf32>
    %cst_40 = arith.constant 9.99999974E-6 : f32
    %72 = vector.broadcast %cst_40 : f32 to vector<8x1xf32>
    %73 = arith.addf %71, %72 : vector<8x1xf32>
    %74 = math.rsqrt %73 : vector<8x1xf32>
    %75 = arith.mulf %58, %74 : vector<8x1xf32>
    %76 = vector.broadcast %67 : vector<8x1xf32> to vector<8x128xf32>
    %77 = arith.subf %56, %76 : vector<8x128xf32>
    %78 = vector.broadcast %75 : vector<8x1xf32> to vector<8x128xf32>
    %79 = arith.mulf %77, %78 : vector<8x128xf32>
    %80 = vector.broadcast %60 : vector<8x1xf32> to vector<8x128xf32>
    %81 = arith.addf %79, %80 : vector<8x128xf32>
    %82 = arith.addf %81, %1 : vector<8x128xf32>
    %cst_41 = arith.constant 0.000000e+00 : f32
    %83 = vector.broadcast %cst_41 : f32 to vector<8x128xf32>
    %84 = arith.maximumf %82, %83 : vector<8x128xf32>
    %c1 = arith.constant 1 : index
    %c0_42 = arith.constant 0 : index
    %c0_43 = arith.constant 0 : index
    %85 = vector.load %arg2[%c1, %c0_42, %c0_43] : memref<2x8x72xbf16, #tpu.memory_space<vmem>>, vector<1x8x72xbf16>
    %86 = vector.shape_cast %85 : vector<1x8x72xbf16> to vector<8x72xbf16>
    %c9_i32_44 = arith.constant 9 : i32
    %87 = tpu.dynamic_rotate %84 by %c9_i32_44 dim 1 : vector<8x128xf32>, i32 -> vector<8x128xf32>
    %c8_i32_45 = arith.constant 8 : i32
    %88 = tpu.dynamic_rotate %84 by %c8_i32_45 dim 1 : vector<8x128xf32>, i32 -> vector<8x128xf32>
    %c7_i32_46 = arith.constant 7 : i32
    %89 = tpu.dynamic_rotate %84 by %c7_i32_46 dim 1 : vector<8x128xf32>, i32 -> vector<8x128xf32>
    %c1_i32_47 = arith.constant 1 : i32
    %90 = tpu.dynamic_rotate %84 by %c1_i32_47 dim 1 : vector<8x128xf32>, i32 -> vector<8x128xf32>
    %c127_i32_48 = arith.constant 127 : i32
    %91 = tpu.dynamic_rotate %84 by %c127_i32_48 dim 1 : vector<8x128xf32>, i32 -> vector<8x128xf32>
    %c121_i32_49 = arith.constant 121 : i32
    %92 = tpu.dynamic_rotate %84 by %c121_i32_49 dim 1 : vector<8x128xf32>, i32 -> vector<8x128xf32>
    %c120_i32_50 = arith.constant 120 : i32
    %93 = tpu.dynamic_rotate %84 by %c120_i32_50 dim 1 : vector<8x128xf32>, i32 -> vector<8x128xf32>
    %c119_i32_51 = arith.constant 119 : i32
    %94 = tpu.dynamic_rotate %84 by %c119_i32_51 dim 1 : vector<8x128xf32>, i32 -> vector<8x128xf32>
    %95 = tpu.concatenate %87, %88, %89, %90, %84, %91, %92, %93, %94 in 0 : vector<8x128xf32>, vector<8x128xf32>, vector<8x128xf32>, vector<8x128xf32>, vector<8x128xf32>, vector<8x128xf32>, vector<8x128xf32>, vector<8x128xf32>, vector<8x128xf32> -> vector<72x128xf32>
    %96 = arith.mulf %95, %0 : vector<72x128xf32>
    %97 = arith.truncf %96 : vector<72x128xf32> to vector<72x128xbf16>
    %cst_52 = arith.constant dense<0.000000e+00> : vector<8x128xf32>
    %98 = tpu.matmul %86, %97, %cst_52 {dimension_numbers = #tpu.dot_dimension_numbers<[1], [0], [0], [1], [0, 0, 1, 1], [], []>} : vector<8x72xbf16>, vector<72x128xbf16>, vector<8x128xf32> -> vector<8x128xf32>
    %c1_53 = arith.constant 1 : index
    %c0_54 = arith.constant 0 : index
    %c0_55 = arith.constant 0 : index
    %99 = vector.load %arg3[%c1_53, %c0_54, %c0_55] : memref<2x8x1xf32, #tpu.memory_space<vmem>>, vector<1x8x1xf32>
    %100 = vector.shape_cast %99 : vector<1x8x1xf32> to vector<8x1xf32>
    %c1_56 = arith.constant 1 : index
    %c0_57 = arith.constant 0 : index
    %c0_58 = arith.constant 0 : index
    %101 = vector.load %arg4[%c1_56, %c0_57, %c0_58] : memref<2x8x1xf32, #tpu.memory_space<vmem>>, vector<1x8x1xf32>
    %102 = vector.shape_cast %101 : vector<1x8x1xf32> to vector<8x1xf32>
    %cst_59 = arith.constant dense<0.000000e+00> : vector<8xf32>
    %103 = vector.multi_reduction <add>, %98, %cst_59 [1] : vector<8x128xf32> to vector<8xf32>
    %104 = vector.shape_cast %103 : vector<8xf32> to vector<8x1xf32>
    %105 = arith.mulf %98, %98 : vector<8x128xf32>
    %cst_60 = arith.constant dense<0.000000e+00> : vector<8xf32>
    %106 = vector.multi_reduction <add>, %105, %cst_60 [1] : vector<8x128xf32> to vector<8xf32>
    %107 = vector.shape_cast %106 : vector<8xf32> to vector<8x1xf32>
    %cst_61 = arith.constant 7.812500e-03 : f32
    %108 = vector.broadcast %cst_61 : f32 to vector<8x1xf32>
    %109 = arith.mulf %104, %108 : vector<8x1xf32>
    %cst_62 = arith.constant 7.812500e-03 : f32
    %110 = vector.broadcast %cst_62 : f32 to vector<8x1xf32>
    %111 = arith.mulf %107, %110 : vector<8x1xf32>
    %112 = arith.mulf %109, %109 : vector<8x1xf32>
    %113 = arith.subf %111, %112 : vector<8x1xf32>
    %cst_63 = arith.constant 9.99999974E-6 : f32
    %114 = vector.broadcast %cst_63 : f32 to vector<8x1xf32>
    %115 = arith.addf %113, %114 : vector<8x1xf32>
    %116 = math.rsqrt %115 : vector<8x1xf32>
    %117 = arith.mulf %100, %116 : vector<8x1xf32>
    %118 = vector.broadcast %109 : vector<8x1xf32> to vector<8x128xf32>
    %119 = arith.subf %98, %118 : vector<8x128xf32>
    %120 = vector.broadcast %117 : vector<8x1xf32> to vector<8x128xf32>
    %121 = arith.mulf %119, %120 : vector<8x128xf32>
    %122 = vector.broadcast %102 : vector<8x1xf32> to vector<8x128xf32>
    %123 = arith.addf %121, %122 : vector<8x128xf32>
    %cst_64 = arith.constant 0.000000e+00 : f32
    %124 = vector.broadcast %cst_64 : f32 to vector<8x128xf32>
    %125 = arith.maximumf %123, %124 : vector<8x128xf32>
    %c1_65 = arith.constant 1 : index
    %c0_66 = arith.constant 0 : index
    %c0_67 = arith.constant 0 : index
    %126 = vector.load %arg5[%c1_65, %c0_66, %c0_67] : memref<2x8x72xbf16, #tpu.memory_space<vmem>>, vector<1x8x72xbf16>
    %127 = vector.shape_cast %126 : vector<1x8x72xbf16> to vector<8x72xbf16>
    %c9_i32_68 = arith.constant 9 : i32
    %128 = tpu.dynamic_rotate %125 by %c9_i32_68 dim 1 : vector<8x128xf32>, i32 -> vector<8x128xf32>
    %c8_i32_69 = arith.constant 8 : i32
    %129 = tpu.dynamic_rotate %125 by %c8_i32_69 dim 1 : vector<8x128xf32>, i32 -> vector<8x128xf32>
    %c7_i32_70 = arith.constant 7 : i32
    %130 = tpu.dynamic_rotate %125 by %c7_i32_70 dim 1 : vector<8x128xf32>, i32 -> vector<8x128xf32>
    %c1_i32_71 = arith.constant 1 : i32
    %131 = tpu.dynamic_rotate %125 by %c1_i32_71 dim 1 : vector<8x128xf32>, i32 -> vector<8x128xf32>
    %c127_i32_72 = arith.constant 127 : i32
    %132 = tpu.dynamic_rotate %125 by %c127_i32_72 dim 1 : vector<8x128xf32>, i32 -> vector<8x128xf32>
    %c121_i32_73 = arith.constant 121 : i32
    %133 = tpu.dynamic_rotate %125 by %c121_i32_73 dim 1 : vector<8x128xf32>, i32 -> vector<8x128xf32>
    %c120_i32_74 = arith.constant 120 : i32
    %134 = tpu.dynamic_rotate %125 by %c120_i32_74 dim 1 : vector<8x128xf32>, i32 -> vector<8x128xf32>
    %c119_i32_75 = arith.constant 119 : i32
    %135 = tpu.dynamic_rotate %125 by %c119_i32_75 dim 1 : vector<8x128xf32>, i32 -> vector<8x128xf32>
    %136 = tpu.concatenate %128, %129, %130, %131, %125, %132, %133, %134, %135 in 0 : vector<8x128xf32>, vector<8x128xf32>, vector<8x128xf32>, vector<8x128xf32>, vector<8x128xf32>, vector<8x128xf32>, vector<8x128xf32>, vector<8x128xf32>, vector<8x128xf32> -> vector<72x128xf32>
    %137 = arith.mulf %136, %0 : vector<72x128xf32>
    %138 = arith.truncf %137 : vector<72x128xf32> to vector<72x128xbf16>
    %cst_76 = arith.constant dense<0.000000e+00> : vector<8x128xf32>
    %139 = tpu.matmul %127, %138, %cst_76 {dimension_numbers = #tpu.dot_dimension_numbers<[1], [0], [0], [1], [0, 0, 1, 1], [], []>} : vector<8x72xbf16>, vector<72x128xbf16>, vector<8x128xf32> -> vector<8x128xf32>
    %c1_77 = arith.constant 1 : index
    %c0_78 = arith.constant 0 : index
    %c0_79 = arith.constant 0 : index
    %140 = vector.load %arg6[%c1_77, %c0_78, %c0_79] : memref<2x8x1xf32, #tpu.memory_space<vmem>>, vector<1x8x1xf32>
    %141 = vector.shape_cast %140 : vector<1x8x1xf32> to vector<8x1xf32>
    %c1_80 = arith.constant 1 : index
    %c0_81 = arith.constant 0 : index
    %c0_82 = arith.constant 0 : index
    %142 = vector.load %arg7[%c1_80, %c0_81, %c0_82] : memref<2x8x1xf32, #tpu.memory_space<vmem>>, vector<1x8x1xf32>
    %143 = vector.shape_cast %142 : vector<1x8x1xf32> to vector<8x1xf32>
    %cst_83 = arith.constant dense<0.000000e+00> : vector<8xf32>
    %144 = vector.multi_reduction <add>, %139, %cst_83 [1] : vector<8x128xf32> to vector<8xf32>
    %145 = vector.shape_cast %144 : vector<8xf32> to vector<8x1xf32>
    %146 = arith.mulf %139, %139 : vector<8x128xf32>
    %cst_84 = arith.constant dense<0.000000e+00> : vector<8xf32>
    %147 = vector.multi_reduction <add>, %146, %cst_84 [1] : vector<8x128xf32> to vector<8xf32>
    %148 = vector.shape_cast %147 : vector<8xf32> to vector<8x1xf32>
    %cst_85 = arith.constant 7.812500e-03 : f32
    %149 = vector.broadcast %cst_85 : f32 to vector<8x1xf32>
    %150 = arith.mulf %145, %149 : vector<8x1xf32>
    %cst_86 = arith.constant 7.812500e-03 : f32
    %151 = vector.broadcast %cst_86 : f32 to vector<8x1xf32>
    %152 = arith.mulf %148, %151 : vector<8x1xf32>
    %153 = arith.mulf %150, %150 : vector<8x1xf32>
    %154 = arith.subf %152, %153 : vector<8x1xf32>
    %cst_87 = arith.constant 9.99999974E-6 : f32
    %155 = vector.broadcast %cst_87 : f32 to vector<8x1xf32>
    %156 = arith.addf %154, %155 : vector<8x1xf32>
    %157 = math.rsqrt %156 : vector<8x1xf32>
    %158 = arith.mulf %141, %157 : vector<8x1xf32>
    %159 = vector.broadcast %150 : vector<8x1xf32> to vector<8x128xf32>
    %160 = arith.subf %139, %159 : vector<8x128xf32>
    %161 = vector.broadcast %158 : vector<8x1xf32> to vector<8x128xf32>
    %162 = arith.mulf %160, %161 : vector<8x128xf32>
    %163 = vector.broadcast %143 : vector<8x1xf32> to vector<8x128xf32>
    %164 = arith.addf %162, %163 : vector<8x128xf32>
    %165 = arith.addf %164, %84 : vector<8x128xf32>
    %cst_88 = arith.constant 0.000000e+00 : f32
    %166 = vector.broadcast %cst_88 : f32 to vector<8x128xf32>
    %167 = arith.maximumf %165, %166 : vector<8x128xf32>
    %c0_89 = arith.constant 0 : index
    %c0_90 = arith.constant 0 : index
    %168 = vector.load %arg8[%c0_89, %c0_90] : memref<8x8xbf16, #tpu.memory_space<vmem>>, vector<8x8xbf16>
    %169 = arith.truncf %167 : vector<8x128xf32> to vector<8x128xbf16>
    %cst_91 = arith.constant dense<0.000000e+00> : vector<8x128xf32>
    %170 = tpu.matmul %168, %169, %cst_91 {dimension_numbers = #tpu.dot_dimension_numbers<[1], [0], [0], [1], [0, 0, 1, 1], [], []>} : vector<8x8xbf16>, vector<8x128xbf16>, vector<8x128xf32> -> vector<8x128xf32>
    %c0_92 = arith.constant 0 : index
    %c0_93 = arith.constant 0 : index
    %171 = vector.load %arg9[%c0_92, %c0_93] : memref<8x1xf32, #tpu.memory_space<vmem>>, vector<8x1xf32>
    %172 = vector.broadcast %171 : vector<8x1xf32> to vector<8x128xf32>
    %173 = arith.addf %170, %172 : vector<8x128xf32>
    %c0_94 = arith.constant 0 : index
    %c0_95 = arith.constant 0 : index
    %174 = vector.load %arg20[%c0_94, %c0_95] : memref<8x128xf32, #tpu.memory_space<vmem>>, vector<8x128xf32>
    tpu.vector_store %arg20[%c0_94, %c0_95], %173 {strides = array<i32>} : memref<8x128xf32, #tpu.memory_space<vmem>>, vector<8x128xf32>,
    %c0_96 = arith.constant 0 : index
    %c0_97 = arith.constant 0 : index
    %175 = vector.load %arg20[%c0_96, %c0_97] : memref<8x128xf32, #tpu.memory_space<vmem>>, vector<1x64xf32>
    %c1_98 = arith.constant 1 : index
    %c0_99 = arith.constant 0 : index
    %176 = vector.load %arg20[%c1_98, %c0_99] : memref<8x128xf32, #tpu.memory_space<vmem>>, vector<1x64xf32>
    %177 = tpu.concatenate %175, %176 in 1 : vector<1x64xf32>, vector<1x64xf32> -> vector<1x128xf32>
    %c0_100 = arith.constant 0 : index
    %c64 = arith.constant 64 : index
    %178 = vector.load %arg20[%c0_100, %c64] : memref<8x128xf32, #tpu.memory_space<vmem>>, vector<1x64xf32>
    %c1_101 = arith.constant 1 : index
    %c64_102 = arith.constant 64 : index
    %179 = vector.load %arg20[%c1_101, %c64_102] : memref<8x128xf32, #tpu.memory_space<vmem>>, vector<1x64xf32>
    %180 = tpu.concatenate %178, %179 in 1 : vector<1x64xf32>, vector<1x64xf32> -> vector<1x128xf32>
    %181 = tpu.concatenate %177, %180 in 0 : vector<1x128xf32>, vector<1x128xf32> -> vector<2x128xf32>
    %c0_103 = arith.constant 0 : index
    %c0_104 = arith.constant 0 : index
    %182 = vector.load %arg10[%c0_103, %c0_104] : memref<128x32xbf16, #tpu.memory_space<vmem>>, vector<128x32xbf16>
    %c0_105 = arith.constant 0 : index
    %c0_106 = arith.constant 0 : index
    %183 = vector.load %arg11[%c0_105, %c0_106] : memref<1x32xf32, #tpu.memory_space<vmem>>, vector<1x32xf32>
    %184 = arith.truncf %181 : vector<2x128xf32> to vector<2x128xbf16>
    %cst_107 = arith.constant dense<0.000000e+00> : vector<2x32xf32>
    %185 = tpu.matmul %184, %182, %cst_107 {dimension_numbers = #tpu.dot_dimension_numbers<[1], [0], [0], [1], [0, 0, 1, 1], [], []>} : vector<2x128xbf16>, vector<128x32xbf16>, vector<2x32xf32> -> vector<2x32xf32>
    %186 = vector.broadcast %183 : vector<1x32xf32> to vector<2x32xf32>
    %187 = arith.addf %185, %186 : vector<2x32xf32>
    %cst_108 = arith.constant 0.000000e+00 : f32
    %188 = vector.broadcast %cst_108 : f32 to vector<2x32xf32>
    %189 = arith.cmpf ogt, %187, %188 : vector<2x32xf32>
    %cst_109 = arith.constant 0.000000e+00 : f32
    %190 = vector.broadcast %cst_109 : f32 to vector<2x32xf32>
    %191 = arith.minimumf %187, %190 : vector<2x32xf32>
    %192 = math.exp %191 : vector<2x32xf32>
    %cst_110 = arith.constant 1.000000e+00 : f32
    %193 = vector.broadcast %cst_110 : f32 to vector<2x32xf32>
    %194 = arith.subf %192, %193 : vector<2x32xf32>
    %195 = arith.select %189, %187, %194 : vector<2x32xi1>, vector<2x32xf32>
    %c0_111 = arith.constant 0 : index
    %c0_112 = arith.constant 0 : index
    %196 = vector.load %arg12[%c0_111, %c0_112] : memref<32x128xbf16, #tpu.memory_space<vmem>>, vector<32x128xbf16>
    %c0_113 = arith.constant 0 : index
    %c0_114 = arith.constant 0 : index
    %197 = vector.load %arg13[%c0_113, %c0_114] : memref<1x128xf32, #tpu.memory_space<vmem>>, vector<1x128xf32>
    %198 = arith.truncf %195 : vector<2x32xf32> to vector<2x32xbf16>
    %cst_115 = arith.constant dense<0.000000e+00> : vector<2x128xf32>
    %199 = tpu.matmul %198, %196, %cst_115 {dimension_numbers = #tpu.dot_dimension_numbers<[1], [0], [0], [1], [0, 0, 1, 1], [], []>} : vector<2x32xbf16>, vector<32x128xbf16>, vector<2x128xf32> -> vector<2x128xf32>
    %200 = vector.broadcast %197 : vector<1x128xf32> to vector<2x128xf32>
    %201 = arith.addf %199, %200 : vector<2x128xf32>
    %c0_116 = arith.constant 0 : index
    %c0_117 = arith.constant 0 : index
    %202 = vector.load %arg19[%c0_116, %c0_117] : memref<2x128xf32, #tpu.memory_space<vmem>>, vector<2x128xf32>
    tpu.vector_store %arg19[%c0_116, %c0_117], %201 {strides = array<i32>} : memref<2x128xf32, #tpu.memory_space<vmem>>, vector<2x128xf32>,
    %c2 = arith.constant 2 : index
    %c0_118 = arith.constant 0 : index
    %203 = vector.load %arg20[%c2, %c0_118] : memref<8x128xf32, #tpu.memory_space<vmem>>, vector<1x64xf32>
    %c3 = arith.constant 3 : index
    %c0_119 = arith.constant 0 : index
    %204 = vector.load %arg20[%c3, %c0_119] : memref<8x128xf32, #tpu.memory_space<vmem>>, vector<1x64xf32>
    %c4 = arith.constant 4 : index
    %c0_120 = arith.constant 0 : index
    %205 = vector.load %arg20[%c4, %c0_120] : memref<8x128xf32, #tpu.memory_space<vmem>>, vector<1x64xf32>
    %c5 = arith.constant 5 : index
    %c0_121 = arith.constant 0 : index
    %206 = vector.load %arg20[%c5, %c0_121] : memref<8x128xf32, #tpu.memory_space<vmem>>, vector<1x64xf32>
    %207 = tpu.concatenate %203, %204, %205, %206 in 1 : vector<1x64xf32>, vector<1x64xf32>, vector<1x64xf32>, vector<1x64xf32> -> vector<1x256xf32>
    %c2_122 = arith.constant 2 : index
    %c64_123 = arith.constant 64 : index
    %208 = vector.load %arg20[%c2_122, %c64_123] : memref<8x128xf32, #tpu.memory_space<vmem>>, vector<1x64xf32>
    %c3_124 = arith.constant 3 : index
    %c64_125 = arith.constant 64 : index
    %209 = vector.load %arg20[%c3_124, %c64_125] : memref<8x128xf32, #tpu.memory_space<vmem>>, vector<1x64xf32>
    %c4_126 = arith.constant 4 : index
    %c64_127 = arith.constant 64 : index
    %210 = vector.load %arg20[%c4_126, %c64_127] : memref<8x128xf32, #tpu.memory_space<vmem>>, vector<1x64xf32>
    %c5_128 = arith.constant 5 : index
    %c64_129 = arith.constant 64 : index
    %211 = vector.load %arg20[%c5_128, %c64_129] : memref<8x128xf32, #tpu.memory_space<vmem>>, vector<1x64xf32>
    %212 = tpu.concatenate %208, %209, %210, %211 in 1 : vector<1x64xf32>, vector<1x64xf32>, vector<1x64xf32>, vector<1x64xf32> -> vector<1x256xf32>
    %213 = tpu.concatenate %207, %212 in 0 : vector<1x256xf32>, vector<1x256xf32> -> vector<2x256xf32>
    %c0_130 = arith.constant 0 : index
    %c0_131 = arith.constant 0 : index
    %214 = vector.load %arg14[%c0_130, %c0_131] : memref<256x32xbf16, #tpu.memory_space<vmem>>, vector<256x32xbf16>
    %c0_132 = arith.constant 0 : index
    %c0_133 = arith.constant 0 : index
    %215 = vector.load %arg15[%c0_132, %c0_133] : memref<1x32xf32, #tpu.memory_space<vmem>>, vector<1x32xf32>
    %216 = arith.truncf %213 : vector<2x256xf32> to vector<2x256xbf16>
    %cst_134 = arith.constant dense<0.000000e+00> : vector<2x32xf32>
    %217 = tpu.matmul %216, %214, %cst_134 {dimension_numbers = #tpu.dot_dimension_numbers<[1], [0], [0], [1], [0, 0, 1, 1], [], []>} : vector<2x256xbf16>, vector<256x32xbf16>, vector<2x32xf32> -> vector<2x32xf32>
    %218 = vector.broadcast %215 : vector<1x32xf32> to vector<2x32xf32>
    %219 = arith.addf %217, %218 : vector<2x32xf32>
    %cst_135 = arith.constant 0.000000e+00 : f32
    %220 = vector.broadcast %cst_135 : f32 to vector<2x32xf32>
    %221 = arith.cmpf ogt, %219, %220 : vector<2x32xf32>
    %cst_136 = arith.constant 0.000000e+00 : f32
    %222 = vector.broadcast %cst_136 : f32 to vector<2x32xf32>
    %223 = arith.minimumf %219, %222 : vector<2x32xf32>
    %224 = math.exp %223 : vector<2x32xf32>
    %cst_137 = arith.constant 1.000000e+00 : f32
    %225 = vector.broadcast %cst_137 : f32 to vector<2x32xf32>
    %226 = arith.subf %224, %225 : vector<2x32xf32>
    %227 = arith.select %221, %219, %226 : vector<2x32xi1>, vector<2x32xf32>
    %c0_138 = arith.constant 0 : index
    %c0_139 = arith.constant 0 : index
    %228 = vector.load %arg16[%c0_138, %c0_139] : memref<32x128xbf16, #tpu.memory_space<vmem>>, vector<32x128xbf16>
    %c0_140 = arith.constant 0 : index
    %c0_141 = arith.constant 0 : index
    %229 = vector.load %arg17[%c0_140, %c0_141] : memref<1x128xf32, #tpu.memory_space<vmem>>, vector<1x128xf32>
    %230 = arith.truncf %227 : vector<2x32xf32> to vector<2x32xbf16>
    %cst_142 = arith.constant dense<0.000000e+00> : vector<2x128xf32>
    %231 = tpu.matmul %230, %228, %cst_142 {dimension_numbers = #tpu.dot_dimension_numbers<[1], [0], [0], [1], [0, 0, 1, 1], [], []>} : vector<2x32xbf16>, vector<32x128xbf16>, vector<2x128xf32> -> vector<2x128xf32>
    %232 = vector.broadcast %229 : vector<1x128xf32> to vector<2x128xf32>
    %233 = arith.addf %231, %232 : vector<2x128xf32>
    %c0_143 = arith.constant 0 : index
    %c0_144 = arith.constant 0 : index
    %234 = vector.load %arg18[%c0_143, %c0_144] : memref<2x128xf32, #tpu.memory_space<vmem>>, vector<2x128xf32>
    tpu.vector_store %arg18[%c0_143, %c0_144], %233 {strides = array<i32>} : memref<2x128xf32, #tpu.memory_space<vmem>>, vector<2x128xf32>,
    return
  }
}

</mosaic_0001>

<llo_original>
// kernel: _lambda_.1
$region0: #{_lambda_.1}
  #allocation0 [shape = 'u32[]', space=smem, size = 0x4, offset = 0x4, fixed_abs, tag = 'smem constant byte address 0x4 - core index']
  #allocation1 [shape = 'u32[72,128]{1,0:T(1,128)}', space=vmem, size = 0x9000, scoped, tag = 'internal scratch']
  #allocation2 [shape = 'f32[8,128]{1,0:T(8,128)}', space=vmem, size = 0x1000, scoped, tag = 'scratch operand']
  %s0 = inlined_call_operand.vmem [shape: f32[8,128], index: 0, kind: input, shape index: {}]
  %s1 = inlined_call_operand.vmem [shape: f32[72,128], index: 1, kind: input, shape index: {}]
  %s2 = inlined_call_operand.vmem [shape: bf16[2,8,72], index: 2, kind: input, shape index: {}]
  %s3 = inlined_call_operand.vmem [shape: f32[2,8,1], index: 3, kind: input, shape index: {}, may-alias: {3,6}]
  %s4 = inlined_call_operand.vmem [shape: f32[2,8,1], index: 4, kind: input, shape index: {}, may-alias: {4,7}]
  %s5 = inlined_call_operand.vmem [shape: bf16[2,8,72], index: 5, kind: input, shape index: {}]
  %s6 = inlined_call_operand.vmem [shape: f32[2,8,1], index: 6, kind: input, shape index: {}, may-alias: {3,6}]
  %s7 = inlined_call_operand.vmem [shape: f32[2,8,1], index: 7, kind: input, shape index: {}, may-alias: {4,7}]
  %s8 = inlined_call_operand.vmem [shape: bf16[8,8], index: 8, kind: input, shape index: {}]
  %s9 = inlined_call_operand.vmem [shape: f32[8,1], index: 9, kind: input, shape index: {}]
  %s10 = inlined_call_operand.vmem [shape: bf16[128,32], index: 10, kind: input, shape index: {}]
  %s11 = inlined_call_operand.vmem [shape: f32[1,32], index: 11, kind: input, shape index: {}]
  %s12 = inlined_call_operand.vmem [shape: bf16[32,128], index: 12, kind: input, shape index: {}]
  %s13 = inlined_call_operand.vmem [shape: f32[1,128], index: 13, kind: input, shape index: {}]
  %s14 = inlined_call_operand.vmem [shape: bf16[256,32], index: 14, kind: input, shape index: {}]
  %s15 = inlined_call_operand.vmem [shape: f32[1,32], index: 15, kind: input, shape index: {}]
  %s16 = inlined_call_operand.vmem [shape: bf16[32,128], index: 16, kind: input, shape index: {}]
  %s17 = inlined_call_operand.vmem [shape: f32[1,128], index: 17, kind: input, shape index: {}]
  %s18 = inlined_call_operand.hbm [shape: f32[2,128], index: 18, kind: output, shape index: {0}]
  %s19 = inlined_call_operand.hbm [shape: f32[2,128], index: 19, kind: output, shape index: {1}]
  %20 = xla_tuple %s18, %s19
  %s21 = sld [smem:[#allocation0]]
  $region90: #{_lambda_.1} parent=0
    _
  %s23 = ssub.s32 1, %s21
  %s24 = scalar_select 0, %s23, %s21
  $region1: #{_lambda_.1} parent=0
    #allocation3 [shape = 'u8[1024]{0}', space=vmem, size = 0x400, scoped, tag = 'output window, operand 0, single buffered']
    #allocation4 [shape = 's32[1]{0}', space=sflag, size = 0x4, scoped, tag = 'scoped memory for _lambda_.1']
    #allocation5 [shape = 'u8[1024]{0}', space=vmem, size = 0x400, scoped, tag = 'output window, operand 1, single buffered']
    #allocation6 [shape = 's32[1]{0}', space=sflag, size = 0x4, scoped, tag = 'scoped memory for _lambda_.1']
    %25 = vsyncpa [#allocation4], 0
    %26 = vsyncpa [#allocation6], 0
    // Predicated region
    $region2: #{_lambda_.1} parent=1 // pred_check
      _
    $region3: #{_lambda_.1} parent=1 // pred_check_branch
      %28 = sbr.rel (0) target = $region5
    $region4: #{_lambda_.1} parent=1 // pred_region
      _
    $region5: #{_lambda_.1} parent=1 // pred_fallthru
      _
    // Predicated region
    $region6: #{_lambda_.1} parent=1 // pred_check
      _
    $region7: #{_lambda_.1} parent=1 // pred_check_branch
      %30 = sbr.rel (0) target = $region9
    $region8: #{_lambda_.1} parent=1 // pred_region
      _
    $region9: #{_lambda_.1} parent=1 // pred_fallthru
      _
    // Predicated region
    $region10: #{_lambda_.1} parent=1 // pred_check
      _
    $region11: #{_lambda_.1} parent=1 // pred_check_branch
      %32 = sbr.rel (0) target = $region13
    $region12: #{_lambda_.1} parent=1 // pred_region
      _
    $region13: #{_lambda_.1} parent=1 // pred_fallthru
      _
    // Predicated region
    $region14: #{_lambda_.1} parent=1 // pred_check
      _
    $region15: #{_lambda_.1} parent=1 // pred_check_branch
      %34 = sbr.rel (0) target = $region17
    $region16: #{_lambda_.1} parent=1 // pred_region
      _
    $region17: #{_lambda_.1} parent=1 // pred_fallthru
      _
    // Predicated region
    $region18: #{_lambda_.1} parent=1 // pred_check
      _
    $region19: #{_lambda_.1} parent=1 // pred_check_branch
      %36 = sbr.rel (0) target = $region21
    $region20: #{_lambda_.1} parent=1 // pred_region
      _
    $region21: #{_lambda_.1} parent=1 // pred_fallthru
      _
    // Predicated region
    $region22: #{_lambda_.1} parent=1 // pred_check
      _
    $region23: #{_lambda_.1} parent=1 // pred_check_branch
      %38 = sbr.rel (0) target = $region25
    $region24: #{_lambda_.1} parent=1 // pred_region
      _
    $region25: #{_lambda_.1} parent=1 // pred_fallthru
      _
    // Predicated region
    $region26: #{_lambda_.1} parent=1 // pred_check
      _
    $region27: #{_lambda_.1} parent=1 // pred_check_branch
      %40 = sbr.rel (0) target = $region29
    $region28: #{_lambda_.1} parent=1 // pred_region
      _
    $region29: #{_lambda_.1} parent=1 // pred_fallthru
      _
    // Predicated region
    $region30: #{_lambda_.1} parent=1 // pred_check
      _
    $region31: #{_lambda_.1} parent=1 // pred_check_branch
      %42 = sbr.rel (0) target = $region33
    $region32: #{_lambda_.1} parent=1 // pred_region
      _
    $region33: #{_lambda_.1} parent=1 // pred_fallthru
      _
    // Predicated region
    $region34: #{_lambda_.1} parent=1 // pred_check
      _
    $region35: #{_lambda_.1} parent=1 // pred_check_branch
      %44 = sbr.rel (0) target = $region37
    $region36: #{_lambda_.1} parent=1 // pred_region
      _
    $region37: #{_lambda_.1} parent=1 // pred_fallthru
      _
    // Predicated region
    $region38: #{_lambda_.1} parent=1 // pred_check
      _
    $region39: #{_lambda_.1} parent=1 // pred_check_branch
      %46 = sbr.rel (0) target = $region41
    $region40: #{_lambda_.1} parent=1 // pred_region
      _
    $region41: #{_lambda_.1} parent=1 // pred_fallthru
      _
    // Predicated region
    $region42: #{_lambda_.1} parent=1 // pred_check
      _
    $region43: #{_lambda_.1} parent=1 // pred_check_branch
      %48 = sbr.rel (0) target = $region45
    $region44: #{_lambda_.1} parent=1 // pred_region
      _
    $region45: #{_lambda_.1} parent=1 // pred_fallthru
      _
    // Predicated region
    $region46: #{_lambda_.1} parent=1 // pred_check
      _
    $region47: #{_lambda_.1} parent=1 // pred_check_branch
      %50 = sbr.rel (0) target = $region49
    $region48: #{_lambda_.1} parent=1 // pred_region
      _
    $region49: #{_lambda_.1} parent=1 // pred_fallthru
      _
    // Predicated region
    $region50: #{_lambda_.1} parent=1 // pred_check
      _
    $region51: #{_lambda_.1} parent=1 // pred_check_branch
      %52 = sbr.rel (0) target = $region53
    $region52: #{_lambda_.1} parent=1 // pred_region
      _
    $region53: #{_lambda_.1} parent=1 // pred_fallthru
      _
    // Predicated region
    $region54: #{_lambda_.1} parent=1 // pred_check
      _
    $region55: #{_lambda_.1} parent=1 // pred_check_branch
      %54 = sbr.rel (0) target = $region57
    $region56: #{_lambda_.1} parent=1 // pred_region
      _
    $region57: #{_lambda_.1} parent=1 // pred_fallthru
      _
    // Predicated region
    $region58: #{_lambda_.1} parent=1 // pred_check
      _
    $region59: #{_lambda_.1} parent=1 // pred_check_branch
      %56 = sbr.rel (0) target = $region61
    $region60: #{_lambda_.1} parent=1 // pred_region
      _
    $region61: #{_lambda_.1} parent=1 // pred_fallthru
      _
    // Predicated region
    $region62: #{_lambda_.1} parent=1 // pred_check
      _
    $region63: #{_lambda_.1} parent=1 // pred_check_branch
      %58 = sbr.rel (0) target = $region65
    $region64: #{_lambda_.1} parent=1 // pred_region
      _
    $region65: #{_lambda_.1} parent=1 // pred_fallthru
      _
    // Predicated region
    $region66: #{_lambda_.1} parent=1 // pred_check
      _
    $region67: #{_lambda_.1} parent=1 // pred_check_branch
      %60 = sbr.rel (0) target = $region69
    $region68: #{_lambda_.1} parent=1 // pred_region
      _
    $region69: #{_lambda_.1} parent=1 // pred_fallthru
      _
    // Predicated region
    $region70: #{_lambda_.1} parent=1 // pred_check
      _
    $region71: #{_lambda_.1} parent=1 // pred_check_branch
      %62 = sbr.rel (0) target = $region73
    $region72: #{_lambda_.1} parent=1 // pred_region
      _
    $region73: #{_lambda_.1} parent=1 // pred_fallthru
      _
    %v64 = vld [vmem:[%s1] sm:$0xff]
    %v65 = vld [vmem:[%s1 + $0x8] sm:$0xff]
    %v66 = vld [vmem:[%s1 + $0x10] sm:$0xff]
    %v67 = vld [vmem:[%s1 + $0x18] sm:$0xff]
    %v68 = vld [vmem:[%s1 + $0x20] sm:$0xff]
    %v69 = vld [vmem:[%s1 + $0x28] sm:$0xff]
    %v70 = vld [vmem:[%s1 + $0x30] sm:$0xff]
    %v71 = vld [vmem:[%s1 + $0x38] sm:$0xff]
    %v72 = vld [vmem:[%s1 + $0x40] sm:$0xff]
    %v73 = vld [vmem:[%s0] sm:$0xff]
    %v74 = vld [vmem:[%s2] sm:$0xf]
    %75 = vrot.lane.b32.xlu0 %v73, 9
    %v76 = vpop.permute.xlu0 %75
    %77 = vrot.lane.b32.xlu0 %v73, 8
    %v78 = vpop.permute.xlu0 %77
    %79 = vrot.lane.b32.xlu0 %v73, 7
    %v80 = vpop.permute.xlu0 %79
    %81 = vrot.lane.b32.xlu0 %v73, 1
    %v82 = vpop.permute.xlu0 %81
    %83 = vrot.lane.b32.xlu0 %v73, 127
    %v84 = vpop.permute.xlu0 %83
    %85 = vrot.lane.b32.xlu0 %v73, 121
    %v86 = vpop.permute.xlu0 %85
    %87 = vrot.lane.b32.xlu0 %v73, 120
    %v88 = vpop.permute.xlu0 %87
    %89 = vrot.lane.b32.xlu0 %v73, 119
    %v90 = vpop.permute.xlu0 %89
    %v91 = vmul.f32 %v76, %v64
    %v92 = vmul.f32 %v78, %v65
    %v93 = vmul.f32 %v80, %v66
    %v94 = vmul.f32 %v82, %v67
    %v95 = vmul.f32 %v73, %v68
    %v96 = vmul.f32 %v84, %v69
    %v97 = vmul.f32 %v86, %v70
    %v98 = vmul.f32 %v88, %v71
    %v99 = vmul.f32 %v90, %v72
    %v100 = vpack.c.bf16 %v92, %v91
    %v101 = vpack.c.bf16 %v94, %v93
    %v102 = vpack.c.bf16 %v96, %v95
    %v103 = vpack.c.bf16 %v98, %v97
    %v104 = vpack.c.bf16 %v99, %v99
    %vm105 = vcmask 588800
    %v107 = vsel %vm105, %v74, 0
    %vm109 = vcmask 1043456
    %v111 = vsel %vm109, %v104, 0
    %113 = vmatpush.bf16.msra.mxu0 0
    %114 = vmatpush.bf16.msra.mxu0 0
    %115 = vmatpush.bf16.msra.mxu0 0
    %116 = vmatpush.bf16.msra.mxu0 %v111
    %117 = vmatpush.bf16.msra.mxu0 %v103
    %118 = vmatpush.bf16.msra.mxu0 %v102
    %119 = vmatpush.bf16.msra.mxu0 %v101
    %120 = vmatpush.bf16.msra.mxu0 %v100
    %121 = vmatmul.bf16.gmra.mxu0 %v107
    %v122 = vpop.f32.mrf.mxu0
    %v123 = vadd.f32 0.0, %v122
    %v124 = vpop.f32.mrf.mxu0
    %125 = vdwg.mxu0
    %v126 = vld [vmem:[%s3] sm:$0xff]
    %v127 = vld [vmem:[%s4] sm:$0xff]
    %128 = vadd.xlane.f32.xlu0 %v123
    %v129 = vpop.xlane.xlu0 %128
    %v130 = vmul.f32 %v123, %v123
    %131 = vadd.xlane.f32.xlu0 %v130
    %v132 = vpop.xlane.xlu0 %131
    %v133 = vmul.f32 %v129, 0.0078125
    %v134 = vmul.f32 %v132, 0.0078125
    %v135 = vmul.f32 %v133, %v133
    %v136 = vsub.f32 %v134, %v135
    %v137 = vadd.f32 %v136, 1e-05
    %v138 = vrsqrt.pop %v137
    %v139 = vmul.f32 %v138, %v137
    %v140 = vmul.f32 %v139, %v138
    %v141 = vmul.f32 0.5, %v140
    %v142 = vsub.f32 1.5, %v141
    %v143 = vmul.f32 %v138, %v142
    %vm144 = vweird.f32 %v137
    %vm145 = vweird.f32 %v138
    %vm146 = vmor %vm144, %vm145
    %v147 = vsel %vm146, %v138, %v143
    %v148 = vmul.f32 %v126, %v147
    %v149 = vsub.f32 %v123, %v133
    %151 = vset.pattern.permute.xlu0 0
    %152 = vperm.xlu0 %151, %v148
    %v153 = vpop.permute.xlu0 %152
    %v155 = vmul.f32 %v149, %v153
    %157 = vset.pattern.permute.xlu0 0
    %158 = vperm.xlu0 %157, %v127
    %v159 = vpop.permute.xlu0 %158
    %v161 = vadd.f32 %v155, %v159
    %v162 = vmax.f32 %v161, 0.0
    %v163 = vld [vmem:[%s5] sm:$0xf]
    %164 = vrot.lane.b32.xlu0 %v162, 9
    %v165 = vpop.permute.xlu0 %164
    %166 = vrot.lane.b32.xlu0 %v162, 8
    %v167 = vpop.permute.xlu0 %166
    %168 = vrot.lane.b32.xlu0 %v162, 7
    %v169 = vpop.permute.xlu0 %168
    %170 = vrot.lane.b32.xlu0 %v162, 1
    %v171 = vpop.permute.xlu0 %170
    %172 = vrot.lane.b32.xlu0 %v162, 127
    %v173 = vpop.permute.xlu0 %172
    %174 = vrot.lane.b32.xlu0 %v162, 121
    %v175 = vpop.permute.xlu0 %174
    %176 = vrot.lane.b32.xlu0 %v162, 120
    %v177 = vpop.permute.xlu0 %176
    %178 = vrot.lane.b32.xlu0 %v162, 119
    %v179 = vpop.permute.xlu0 %178
    %v180 = vmul.f32 %v165, %v64
    %v181 = vmul.f32 %v167, %v65
    %v182 = vmul.f32 %v169, %v66
    %v183 = vmul.f32 %v171, %v67
    %v184 = vmul.f32 %v162, %v68
    %v185 = vmul.f32 %v173, %v69
    %v186 = vmul.f32 %v175, %v70
    %v187 = vmul.f32 %v177, %v71
    %v188 = vmul.f32 %v179, %v72
    %v189 = vpack.c.bf16 %v181, %v180
    %v190 = vpack.c.bf16 %v183, %v182
    %v191 = vpack.c.bf16 %v185, %v184
    %v192 = vpack.c.bf16 %v187, %v186
    %v193 = vpack.c.bf16 %v188, %v188
    %v195 = vsel %vm105, %v163, 0
    %v198 = vsel %vm109, %v193, 0
    %200 = vmatpush.bf16.msra.mxu0 0
    %201 = vmatpush.bf16.msra.mxu0 0
    %202 = vmatpush.bf16.msra.mxu0 0
    %203 = vmatpush.bf16.msra.mxu0 %v198
    %204 = vmatpush.bf16.msra.mxu0 %v192
    %205 = vmatpush.bf16.msra.mxu0 %v191
    %206 = vmatpush.bf16.msra.mxu0 %v190
    %207 = vmatpush.bf16.msra.mxu0 %v189
    %208 = vmatmul.bf16.gmra.mxu0 %v195
    %v209 = vpop.f32.mrf.mxu0
    %v210 = vadd.f32 0.0, %v209
    %v211 = vpop.f32.mrf.mxu0
    %212 = vdwg.mxu0
    %v213 = vld [vmem:[%s6] sm:$0xff]
    %v214 = vld [vmem:[%s7] sm:$0xff]
    %215 = vadd.xlane.f32.xlu0 %v210
    %v216 = vpop.xlane.xlu0 %215
    %v217 = vmul.f32 %v210, %v210
    %218 = vadd.xlane.f32.xlu0 %v217
    %v219 = vpop.xlane.xlu0 %218
    %v220 = vmul.f32 %v216, 0.0078125
    %v221 = vmul.f32 %v219, 0.0078125
    %v222 = vmul.f32 %v220, %v220
    %v223 = vsub.f32 %v221, %v222
    %v224 = vadd.f32 %v223, 1e-05
    %v225 = vrsqrt.pop %v224
    %v226 = vmul.f32 %v225, %v224
    %v227 = vmul.f32 %v226, %v225
    %v228 = vmul.f32 0.5, %v227
    %v229 = vsub.f32 1.5, %v228
    %v230 = vmul.f32 %v225, %v229
    %vm231 = vweird.f32 %v224
    %vm232 = vweird.f32 %v225
    %vm233 = vmor %vm231, %vm232
    %v234 = vsel %vm233, %v225, %v230
    %v235 = vmul.f32 %v213, %v234
    %v236 = vsub.f32 %v210, %v220
    %238 = vset.pattern.permute.xlu0 0
    %239 = vperm.xlu0 %238, %v235
    %v240 = vpop.permute.xlu0 %239
    %v242 = vmul.f32 %v236, %v240
    %244 = vset.pattern.permute.xlu0 0
    %245 = vperm.xlu0 %244, %v214
    %v246 = vpop.permute.xlu0 %245
    %v248 = vadd.f32 %v242, %v246
    %v249 = vadd.f32 %v248, %v73
    %v250 = vmax.f32 %v249, 0.0
    %s251 = scalar_lea.vmem %s2, 4
    %v252 = vld [vmem:[%s251] sm:$0xf]
    %253 = vrot.lane.b32.xlu0 %v250, 9
    %v254 = vpop.permute.xlu0 %253
    %255 = vrot.lane.b32.xlu0 %v250, 8
    %v256 = vpop.permute.xlu0 %255
    %257 = vrot.lane.b32.xlu0 %v250, 7
    %v258 = vpop.permute.xlu0 %257
    %259 = vrot.lane.b32.xlu0 %v250, 1
    %v260 = vpop.permute.xlu0 %259
    %261 = vrot.lane.b32.xlu0 %v250, 127
    %v262 = vpop.permute.xlu0 %261
    %263 = vrot.lane.b32.xlu0 %v250, 121
    %v264 = vpop.permute.xlu0 %263
    %265 = vrot.lane.b32.xlu0 %v250, 120
    %v266 = vpop.permute.xlu0 %265
    %267 = vrot.lane.b32.xlu0 %v250, 119
    %v268 = vpop.permute.xlu0 %267
    %v269 = vmul.f32 %v254, %v64
    %v270 = vmul.f32 %v256, %v65
    %v271 = vmul.f32 %v258, %v66
    %v272 = vmul.f32 %v260, %v67
    %v273 = vmul.f32 %v250, %v68
    %v274 = vmul.f32 %v262, %v69
    %v275 = vmul.f32 %v264, %v70
    %v276 = vmul.f32 %v266, %v71
    %v277 = vmul.f32 %v268, %v72
    %v278 = vpack.c.bf16 %v270, %v269
    %v279 = vpack.c.bf16 %v272, %v271
    %v280 = vpack.c.bf16 %v274, %v273
    %v281 = vpack.c.bf16 %v276, %v275
    %v282 = vpack.c.bf16 %v277, %v277
    %v284 = vsel %vm105, %v252, 0
    %v287 = vsel %vm109, %v282, 0
    %289 = vmatpush.bf16.msra.mxu0 0
    %290 = vmatpush.bf16.msra.mxu0 0
    %291 = vmatpush.bf16.msra.mxu0 0
    %292 = vmatpush.bf16.msra.mxu0 %v287
    %293 = vmatpush.bf16.msra.mxu0 %v281
    %294 = vmatpush.bf16.msra.mxu0 %v280
    %295 = vmatpush.bf16.msra.mxu0 %v279
    %296 = vmatpush.bf16.msra.mxu0 %v278
    %297 = vmatmul.bf16.gmra.mxu0 %v284
    %v298 = vpop.f32.mrf.mxu0
    %v299 = vadd.f32 0.0, %v298
    %v300 = vpop.f32.mrf.mxu0
    %301 = vdwg.mxu0
    %s302 = scalar_lea.vmem %s3, 8
    %v303 = vld [vmem:[%s302] sm:$0xff]
    %s304 = scalar_lea.vmem %s4, 8
    %v305 = vld [vmem:[%s304] sm:$0xff]
    %306 = vadd.xlane.f32.xlu0 %v299
    %v307 = vpop.xlane.xlu0 %306
    %v308 = vmul.f32 %v299, %v299
    %309 = vadd.xlane.f32.xlu0 %v308
    %v310 = vpop.xlane.xlu0 %309
    %v311 = vmul.f32 %v307, 0.0078125
    %v312 = vmul.f32 %v310, 0.0078125
    %v313 = vmul.f32 %v311, %v311
    %v314 = vsub.f32 %v312, %v313
    %v315 = vadd.f32 %v314, 1e-05
    %v316 = vrsqrt.pop %v315
    %v317 = vmul.f32 %v316, %v315
    %v318 = vmul.f32 %v317, %v316
    %v319 = vmul.f32 0.5, %v318
    %v320 = vsub.f32 1.5, %v319
    %v321 = vmul.f32 %v316, %v320
    %vm322 = vweird.f32 %v315
    %vm323 = vweird.f32 %v316
    %vm324 = vmor %vm322, %vm323
    %v325 = vsel %vm324, %v316, %v321
    %v326 = vmul.f32 %v303, %v325
    %v327 = vsub.f32 %v299, %v311
    %329 = vset.pattern.permute.xlu0 0
    %330 = vperm.xlu0 %329, %v326
    %v331 = vpop.permute.xlu0 %330
    %v333 = vmul.f32 %v327, %v331
    %335 = vset.pattern.permute.xlu0 0
    %336 = vperm.xlu0 %335, %v305
    %v337 = vpop.permute.xlu0 %336
    %v339 = vadd.f32 %v333, %v337
    %v340 = vmax.f32 %v339, 0.0
    %s341 = scalar_lea.vmem %s5, 4
    %v342 = vld [vmem:[%s341] sm:$0xf]
    %343 = vrot.lane.b32.xlu0 %v340, 9
    %v344 = vpop.permute.xlu0 %343
    %345 = vrot.lane.b32.xlu0 %v340, 8
    %v346 = vpop.permute.xlu0 %345
    %347 = vrot.lane.b32.xlu0 %v340, 7
    %v348 = vpop.permute.xlu0 %347
    %349 = vrot.lane.b32.xlu0 %v340, 1
    %v350 = vpop.permute.xlu0 %349
    %351 = vrot.lane.b32.xlu0 %v340, 127
    %v352 = vpop.permute.xlu0 %351
    %353 = vrot.lane.b32.xlu0 %v340, 121
    %v354 = vpop.permute.xlu0 %353
    %355 = vrot.lane.b32.xlu0 %v340, 120
    %v356 = vpop.permute.xlu0 %355
    %357 = vrot.lane.b32.xlu0 %v340, 119
    %v358 = vpop.permute.xlu0 %357
    %v359 = vmul.f32 %v344, %v64
    %v360 = vmul.f32 %v346, %v65
    %v361 = vmul.f32 %v348, %v66
    %v362 = vmul.f32 %v350, %v67
    %v363 = vmul.f32 %v340, %v68
    %v364 = vmul.f32 %v352, %v69
    %v365 = vmul.f32 %v354, %v70
    %v366 = vmul.f32 %v356, %v71
    %v367 = vmul.f32 %v358, %v72
    %v368 = vpack.c.bf16 %v360, %v359
    %v369 = vpack.c.bf16 %v362, %v361
    %v370 = vpack.c.bf16 %v364, %v363
    %v371 = vpack.c.bf16 %v366, %v365
    %v372 = vpack.c.bf16 %v367, %v367
    %v374 = vsel %vm105, %v342, 0
    %v377 = vsel %vm109, %v372, 0
    %379 = vmatpush.bf16.msra.mxu0 0
    %380 = vmatpush.bf16.msra.mxu0 0
    %381 = vmatpush.bf16.msra.mxu0 0
    %382 = vmatpush.bf16.msra.mxu0 %v377
    %383 = vmatpush.bf16.msra.mxu0 %v371
    %384 = vmatpush.bf16.msra.mxu0 %v370
    %385 = vmatpush.bf16.msra.mxu0 %v369
    %386 = vmatpush.bf16.msra.mxu0 %v368
    %387 = vmatmul.bf16.gmra.mxu0 %v374
    %v388 = vpop.f32.mrf.mxu0
    %v389 = vadd.f32 0.0, %v388
    %v390 = vpop.f32.mrf.mxu0
    %391 = vdwg.mxu0
    %s392 = scalar_lea.vmem %s6, 8
    %v393 = vld [vmem:[%s392] sm:$0xff]
    %s394 = scalar_lea.vmem %s7, 8
    %v395 = vld [vmem:[%s394] sm:$0xff]
    %396 = vadd.xlane.f32.xlu0 %v389
    %v397 = vpop.xlane.xlu0 %396
    %v398 = vmul.f32 %v389, %v389
    %399 = vadd.xlane.f32.xlu0 %v398
    %v400 = vpop.xlane.xlu0 %399
    %v401 = vmul.f32 %v397, 0.0078125
    %v402 = vmul.f32 %v400, 0.0078125
    %v403 = vmul.f32 %v401, %v401
    %v404 = vsub.f32 %v402, %v403
    %v405 = vadd.f32 %v404, 1e-05
    %v406 = vrsqrt.pop %v405
    %v407 = vmul.f32 %v406, %v405
    %v408 = vmul.f32 %v407, %v406
    %v409 = vmul.f32 0.5, %v408
    %v410 = vsub.f32 1.5, %v409
    %v411 = vmul.f32 %v406, %v410
    %vm412 = vweird.f32 %v405
    %vm413 = vweird.f32 %v406
    %vm414 = vmor %vm412, %vm413
    %v415 = vsel %vm414, %v406, %v411
    %v416 = vmul.f32 %v393, %v415
    %v417 = vsub.f32 %v389, %v401
    %419 = vset.pattern.permute.xlu0 0
    %420 = vperm.xlu0 %419, %v416
    %v421 = vpop.permute.xlu0 %420
    %v423 = vmul.f32 %v417, %v421
    %425 = vset.pattern.permute.xlu0 0
    %426 = vperm.xlu0 %425, %v395
    %v427 = vpop.permute.xlu0 %426
    %v429 = vadd.f32 %v423, %v427
    %v430 = vadd.f32 %v429, %v250
    %v431 = vmax.f32 %v430, 0.0
    %v432 = vld [vmem:[%s8] sm:$0xf]
    %v433 = vpack.c.bf16 %v431, %v431
    %v434 = vld [vmem:[%s9] sm:$0xff]
    %436 = vset.pattern.permute.xlu0 0
    %437 = vperm.xlu0 %436, %v434
    %v438 = vpop.permute.xlu0 %437
    %vm440 = vcmask 64512
    %v442 = vsel %vm440, %v432, 0
    %v445 = vsel %vm109, %v433, 0
    %447 = vmatpush.bf16.msra.mxu0 0
    %448 = vmatpush.bf16.msra.mxu0 0
    %449 = vmatpush.bf16.msra.mxu0 0
    %450 = vmatpush.bf16.msra.mxu0 0
    %451 = vmatpush.bf16.msra.mxu0 0
    %452 = vmatpush.bf16.msra.mxu0 0
    %453 = vmatpush.bf16.msra.mxu0 0
    %454 = vmatpush.bf16.msra.mxu0 %v445
    %455 = vmatmul.bf16.gmra.mxu0 %v442
    %v456 = vpop.f32.mrf.mxu0
    %v457 = vadd.f32 %v438, %v456
    %v458 = vpop.f32.mrf.mxu0
    %459 = vdwg.mxu0
    %460 = vst [vmem:[#allocation2] sm:$0xff] %v457
    %v461 = vld [vmem:[#allocation2] sm:$0x1]
    %v462 = vld [vmem:[#allocation2 + $0x1] sm:$0x1]
    %464 = vrot.lane.b32.xlu0 %v462, 64
    %v465 = vpop.permute.xlu0 %464
    %vm467 = vcmask 523264
    %v468 = vsel %vm467, %v461, %v465
    %470 = vrot.lane.b32.xlu0 %v461, 64
    %v471 = vpop.permute.xlu0 %470
    %v473 = vsel %vm467, %v471, %v462
    %v475 = vrot.slane %v473, 7
    %vm477 = vcmask 1040384
    %v478 = vsel %vm477, %v468, %v475
    %v479 = vld [vmem:[%s10] sm:$0xf]
    %v480 = vld [vmem:[%s10 + $0x4] sm:$0xf]
    %v481 = vld [vmem:[%s10 + $0x8] sm:$0xf]
    %v482 = vld [vmem:[%s10 + $0xc] sm:$0xf]
    %v483 = vld [vmem:[%s10 + $0x10] sm:$0xf]
    %v484 = vld [vmem:[%s10 + $0x14] sm:$0xf]
    %v485 = vld [vmem:[%s10 + $0x18] sm:$0xf]
    %v486 = vld [vmem:[%s10 + $0x1c] sm:$0xf]
    %v487 = vld [vmem:[%s10 + $0x20] sm:$0xf]
    %v488 = vld [vmem:[%s10 + $0x24] sm:$0xf]
    %v489 = vld [vmem:[%s10 + $0x28] sm:$0xf]
    %v490 = vld [vmem:[%s10 + $0x2c] sm:$0xf]
    %v491 = vld [vmem:[%s10 + $0x30] sm:$0xf]
    %v492 = vld [vmem:[%s10 + $0x34] sm:$0xf]
    %v493 = vld [vmem:[%s10 + $0x38] sm:$0xf]
    %v494 = vld [vmem:[%s10 + $0x3c] sm:$0xf]
    %v495 = vld [vmem:[%s11] sm:$0x1]
    %v496 = vpack.c.bf16 %v478, %v478
    %v498 = vperm.slane %v495, 0
    %v516 = vunpack.c.l.b16 %v479
    %v517 = vunpack.c.l.b16 %v480
    %v518 = vunpack.c.l.b16 %v481
    %v519 = vunpack.c.l.b16 %v482
    %v520 = vunpack.c.l.b16 %v483
    %v521 = vunpack.c.l.b16 %v484
    %v522 = vunpack.c.l.b16 %v485
    %v523 = vunpack.c.l.b16 %v486
    %v524 = vunpack.c.l.b16 %v487
    %v525 = vunpack.c.l.b16 %v488
    %v526 = vunpack.c.l.b16 %v489
    %v527 = vunpack.c.l.b16 %v490
    %v528 = vunpack.c.l.b16 %v491
    %v529 = vunpack.c.l.b16 %v492
    %v530 = vunpack.c.l.b16 %v493
    %v531 = vunpack.c.l.b16 %v494
    %v532 = vpack.c.b16 %v517, %v516
    %v533 = vpack.c.b16 %v519, %v518
    %v534 = vpack.c.b16 %v521, %v520
    %v535 = vpack.c.b16 %v523, %v522
    %v536 = vpack.c.b16 %v525, %v524
    %v537 = vpack.c.b16 %v527, %v526
    %v538 = vpack.c.b16 %v529, %v528
    %v539 = vpack.c.b16 %v531, %v530
    %548 = vmatpush.bf16.msra.mxu0 %v539
    %549 = vmatpush.bf16.msra.mxu0 %v538
    %550 = vmatpush.bf16.msra.mxu0 %v537
    %551 = vmatpush.bf16.msra.mxu0 %v536
    %552 = vmatpush.bf16.msra.mxu0 %v535
    %553 = vmatpush.bf16.msra.mxu0 %v534
    %554 = vmatpush.bf16.msra.mxu0 %v533
    %555 = vmatpush.bf16.msra.mxu0 %v532
    %556 = vmatmul.bf16.gmra.mxu0 %v496
    %v557 = vpop.f32.mrf.mxu0
    %v558 = vadd.f32 %v498, %v557
    %v559 = vpop.f32.mrf.mxu0
    %560 = vdwg.mxu0
    %vm561 = vcmp.gt.f32.partialorder %v558, 0.0
    %v562 = vmin.f32 %v558, 0.0
    %v563 = vmul.f32 %v562, 1.442695
    %v564 = vpow.pop %v563
    %v565 = vsub.f32 %v564, 1.0
    %v566 = vsel %vm561, %v558, %v565
    %v567 = vld [vmem:[%s12] sm:$0xf]
    %v568 = vld [vmem:[%s12 + $0x4] sm:$0xf]
    %v569 = vld [vmem:[%s12 + $0x8] sm:$0xf]
    %v570 = vld [vmem:[%s12 + $0xc] sm:$0xf]
    %v571 = vld [vmem:[%s13] sm:$0x1]
    %v572 = vpack.c.bf16 %v566, %v566
    %v574 = vperm.slane %v571, 0
    %v580 = vunpack.c.l.b16 %v567
    %v581 = vunpack.c.l.b16 %v568
    %v582 = vunpack.c.l.b16 %v569
    %v583 = vunpack.c.l.b16 %v570
    %v584 = vpack.c.b16 %v581, %v580
    %v585 = vpack.c.b16 %v583, %v582
    %vm588 = vcmask 261120
    %v590 = vsel %vm588, %v572, 0
    %592 = vmatpush.bf16.msra.mxu0 0
    %593 = vmatpush.bf16.msra.mxu0 0
    %594 = vmatpush.bf16.msra.mxu0 0
    %595 = vmatpush.bf16.msra.mxu0 0
    %596 = vmatpush.bf16.msra.mxu0 0
    %597 = vmatpush.bf16.msra.mxu0 0
    %598 = vmatpush.bf16.msra.mxu0 %v585
    %599 = vmatpush.bf16.msra.mxu0 %v584
    %600 = vmatmul.bf16.gmra.mxu0 %v590
    %v601 = vpop.f32.mrf.mxu0
    %v602 = vadd.f32 %v574, %v601
    %v603 = vpop.f32.mrf.mxu0
    %604 = vdwg.mxu0
    %605 = vst [vmem:[#allocation5] sm:$0x3] %v602
    %v606 = vld [vmem:[#allocation2 + $0x2] sm:$0x1]
    %v607 = vld [vmem:[#allocation2 + $0x3] sm:$0x1]
    %v608 = vld [vmem:[#allocation2 + $0x4] sm:$0x1]
    %v609 = vld [vmem:[#allocation2 + $0x5] sm:$0x1]
    %611 = vrot.lane.b32.xlu0 %v607, 64
    %v612 = vpop.permute.xlu0 %611
    %615 = vrot.lane.b32.xlu0 %v609, 64
    %v616 = vpop.permute.xlu0 %615
    %v618 = vsel %vm467, %v606, %v612
    %v619 = vsel %vm467, %v608, %v616
    %621 = vrot.lane.b32.xlu0 %v606, 64
    %v622 = vpop.permute.xlu0 %621
    %625 = vrot.lane.b32.xlu0 %v608, 64
    %v626 = vpop.permute.xlu0 %625
    %v628 = vsel %vm467, %v622, %v607
    %v629 = vsel %vm467, %v626, %v609
    %v632 = vrot.slane %v628, 7
    %v633 = vrot.slane %v629, 7
    %v636 = vsel %vm477, %v618, %v632
    %v637 = vsel %vm477, %v619, %v633
    %v638 = vld [vmem:[%s14] sm:$0xf]
    %v639 = vld [vmem:[%s14 + $0x4] sm:$0xf]
    %v640 = vld [vmem:[%s14 + $0x8] sm:$0xf]
    %v641 = vld [vmem:[%s14 + $0xc] sm:$0xf]
    %v642 = vld [vmem:[%s14 + $0x10] sm:$0xf]
    %v643 = vld [vmem:[%s14 + $0x14] sm:$0xf]
    %v644 = vld [vmem:[%s14 + $0x18] sm:$0xf]
    %v645 = vld [vmem:[%s14 + $0x1c] sm:$0xf]
    %v646 = vld [vmem:[%s14 + $0x20] sm:$0xf]
    %v647 = vld [vmem:[%s14 + $0x24] sm:$0xf]
    %v648 = vld [vmem:[%s14 + $0x28] sm:$0xf]
    %v649 = vld [vmem:[%s14 + $0x2c] sm:$0xf]
    %v650 = vld [vmem:[%s14 + $0x30] sm:$0xf]
    %v651 = vld [vmem:[%s14 + $0x34] sm:$0xf]
    %v652 = vld [vmem:[%s14 + $0x38] sm:$0xf]
    %v653 = vld [vmem:[%s14 + $0x3c] sm:$0xf]
    %v654 = vld [vmem:[%s14 + $0x40] sm:$0xf]
    %v655 = vld [vmem:[%s14 + $0x44] sm:$0xf]
    %v656 = vld [vmem:[%s14 + $0x48] sm:$0xf]
    %v657 = vld [vmem:[%s14 + $0x4c] sm:$0xf]
    %v658 = vld [vmem:[%s14 + $0x50] sm:$0xf]
    %v659 = vld [vmem:[%s14 + $0x54] sm:$0xf]
    %v660 = vld [vmem:[%s14 + $0x58] sm:$0xf]
    %v661 = vld [vmem:[%s14 + $0x5c] sm:$0xf]
    %v662 = vld [vmem:[%s14 + $0x60] sm:$0xf]
    %v663 = vld [vmem:[%s14 + $0x64] sm:$0xf]
    %v664 = vld [vmem:[%s14 + $0x68] sm:$0xf]
    %v665 = vld [vmem:[%s14 + $0x6c] sm:$0xf]
    %v666 = vld [vmem:[%s14 + $0x70] sm:$0xf]
    %v667 = vld [vmem:[%s14 + $0x74] sm:$0xf]
    %v668 = vld [vmem:[%s14 + $0x78] sm:$0xf]
    %v669 = vld [vmem:[%s14 + $0x7c] sm:$0xf]
    %v670 = vld [vmem:[%s15] sm:$0x1]
    %v671 = vpack.c.bf16 %v636, %v636
    %v672 = vpack.c.bf16 %v637, %v637
    %v674 = vperm.slane %v670, 0
    %v708 = vunpack.c.l.b16 %v638
    %v709 = vunpack.c.l.b16 %v639
    %v710 = vunpack.c.l.b16 %v640
    %v711 = vunpack.c.l.b16 %v641
    %v712 = vunpack.c.l.b16 %v642
    %v713 = vunpack.c.l.b16 %v643
    %v714 = vunpack.c.l.b16 %v644
    %v715 = vunpack.c.l.b16 %v645
    %v716 = vunpack.c.l.b16 %v646
    %v717 = vunpack.c.l.b16 %v647
    %v718 = vunpack.c.l.b16 %v648
    %v719 = vunpack.c.l.b16 %v649
    %v720 = vunpack.c.l.b16 %v650
    %v721 = vunpack.c.l.b16 %v651
    %v722 = vunpack.c.l.b16 %v652
    %v723 = vunpack.c.l.b16 %v653
    %v724 = vunpack.c.l.b16 %v654
    %v725 = vunpack.c.l.b16 %v655
    %v726 = vunpack.c.l.b16 %v656
    %v727 = vunpack.c.l.b16 %v657
    %v728 = vunpack.c.l.b16 %v658
    %v729 = vunpack.c.l.b16 %v659
    %v730 = vunpack.c.l.b16 %v660
    %v731 = vunpack.c.l.b16 %v661
    %v732 = vunpack.c.l.b16 %v662
    %v733 = vunpack.c.l.b16 %v663
    %v734 = vunpack.c.l.b16 %v664
    %v735 = vunpack.c.l.b16 %v665
    %v736 = vunpack.c.l.b16 %v666
    %v737 = vunpack.c.l.b16 %v667
    %v738 = vunpack.c.l.b16 %v668
    %v739 = vunpack.c.l.b16 %v669
    %v740 = vpack.c.b16 %v709, %v708
    %v741 = vpack.c.b16 %v711, %v710
    %v742 = vpack.c.b16 %v713, %v712
    %v743 = vpack.c.b16 %v715, %v714
    %v744 = vpack.c.b16 %v717, %v716
    %v745 = vpack.c.b16 %v719, %v718
    %v746 = vpack.c.b16 %v721, %v720
    %v747 = vpack.c.b16 %v723, %v722
    %v748 = vpack.c.b16 %v725, %v724
    %v749 = vpack.c.b16 %v727, %v726
    %v750 = vpack.c.b16 %v729, %v728
    %v751 = vpack.c.b16 %v731, %v730
    %v752 = vpack.c.b16 %v733, %v732
    %v753 = vpack.c.b16 %v735, %v734
    %v754 = vpack.c.b16 %v737, %v736
    %v755 = vpack.c.b16 %v739, %v738
    %772 = vmatpush.bf16.msra.mxu0 %v747
    %773 = vmatpush.bf16.msra.mxu0 %v746
    %774 = vmatpush.bf16.msra.mxu0 %v745
    %775 = vmatpush.bf16.msra.mxu0 %v744
    %776 = vmatpush.bf16.msra.mxu0 %v743
    %777 = vmatpush.bf16.msra.mxu0 %v742
    %778 = vmatpush.bf16.msra.mxu0 %v741
    %779 = vmatpush.bf16.msra.mxu0 %v740
    %780 = vmatmul.bf16.gmra.mxu0 %v671
    %v781 = vpop.f32.mrf.mxu0
    %v782 = vadd.f32 %v674, %v781
    %v783 = vpop.f32.mrf.mxu0
    %784 = vdwg.mxu0
    %785 = vmatpush.bf16.msra.mxu0 %v755
    %786 = vmatpush.bf16.msra.mxu0 %v754
    %787 = vmatpush.bf16.msra.mxu0 %v753
    %788 = vmatpush.bf16.msra.mxu0 %v752
    %789 = vmatpush.bf16.msra.mxu0 %v751
    %790 = vmatpush.bf16.msra.mxu0 %v750
    %791 = vmatpush.bf16.msra.mxu0 %v749
    %792 = vmatpush.bf16.msra.mxu0 %v748
    %793 = vmatmul.bf16.gmra.mxu0 %v672
    %v794 = vpop.f32.mrf.mxu0
    %v795 = vadd.f32 %v782, %v794
    %v796 = vpop.f32.mrf.mxu0
    %797 = vdwg.mxu0
    %vm798 = vcmp.gt.f32.partialorder %v795, 0.0
    %v799 = vmin.f32 %v795, 0.0
    %v800 = vmul.f32 %v799, 1.442695
    %v801 = vpow.pop %v800
    %v802 = vsub.f32 %v801, 1.0
    %v803 = vsel %vm798, %v795, %v802
    %v804 = vld [vmem:[%s16] sm:$0xf]
    %v805 = vld [vmem:[%s16 + $0x4] sm:$0xf]
    %v806 = vld [vmem:[%s16 + $0x8] sm:$0xf]
    %v807 = vld [vmem:[%s16 + $0xc] sm:$0xf]
    %v808 = vld [vmem:[%s17] sm:$0x1]
    %v809 = vpack.c.bf16 %v803, %v803
    %v811 = vperm.slane %v808, 0
    %v817 = vunpack.c.l.b16 %v804
    %v818 = vunpack.c.l.b16 %v805
    %v819 = vunpack.c.l.b16 %v806
    %v820 = vunpack.c.l.b16 %v807
    %v821 = vpack.c.b16 %v818, %v817
    %v822 = vpack.c.b16 %v820, %v819
    %v826 = vsel %vm588, %v809, 0
    %828 = vmatpush.bf16.msra.mxu0 0
    %829 = vmatpush.bf16.msra.mxu0 0
    %830 = vmatpush.bf16.msra.mxu0 0
    %831 = vmatpush.bf16.msra.mxu0 0
    %832 = vmatpush.bf16.msra.mxu0 0
    %833 = vmatpush.bf16.msra.mxu0 0
    %834 = vmatpush.bf16.msra.mxu0 %v822
    %835 = vmatpush.bf16.msra.mxu0 %v821
    %836 = vmatmul.bf16.gmra.mxu0 %v826
    %v837 = vpop.f32.mrf.mxu0
    %v838 = vadd.f32 %v811, %v837
    %v839 = vpop.f32.mrf.mxu0
    %840 = vdwg.mxu0
    %841 = vst [vmem:[#allocation3] sm:$0x3] %v838
    // Predicated region
    $region74: #{_lambda_.1} parent=1 // pred_check
      _
    $region75: #{_lambda_.1} parent=1 // pred_check_branch
      %843 = sbr.rel (0) target = $region77
    $region76: #{_lambda_.1} parent=1 // pred_region
      %845 = vsyncadd [#allocation4], 0
      %s847 = sshll.u32 [#allocation3], 4
      %s848 = int_to_ptr.vmem [resolvable:$true] %s847
      %s849 = sshll.u32 %s18, 4
      %s850 = int_to_ptr.hbm [resolvable:$true] %s849
      %852 = dma.vmem_to_hbm [thread:$0]  %s848, 32, %s850, [#allocation4]
    $region77: #{_lambda_.1} parent=1 // pred_fallthru
      _
    // Predicated region
    $region78: #{_lambda_.1} parent=1 // pred_check
      _
    $region79: #{_lambda_.1} parent=1 // pred_check_branch
      %854 = sbr.rel (0) target = $region81
    $region80: #{_lambda_.1} parent=1 // pred_region
      %856 = vsyncadd [#allocation6], 0
      %s858 = sshll.u32 [#allocation5], 4
      %s859 = int_to_ptr.vmem [resolvable:$true] %s858
      %s860 = sshll.u32 %s19, 4
      %s861 = int_to_ptr.hbm [resolvable:$true] %s860
      %863 = dma.vmem_to_hbm [thread:$0]  %s859, 32, %s861, [#allocation6]
    $region81: #{_lambda_.1} parent=1 // pred_fallthru
      _
    // Predicated region
    $region82: #{_lambda_.1} parent=1 // pred_check
      _
    $region83: #{_lambda_.1} parent=1 // pred_check_branch
      %865 = sbr.rel (0) target = $region85
    $region84: #{_lambda_.1} parent=1 // pred_region
      %867 = dma.done [#allocation4], 32
    $region85: #{_lambda_.1} parent=1 // pred_fallthru
      _
    // Predicated region
    $region86: #{_lambda_.1} parent=1 // pred_check
      _
    $region87: #{_lambda_.1} parent=1 // pred_check_branch
      %869 = sbr.rel (0) target = $region89
    $region88: #{_lambda_.1} parent=1 // pred_region
      %871 = dma.done [#allocation6], 32
    $region89: #{_lambda_.1} parent=1 // pred_fallthru
      _
    %872 = vsyncpa [#allocation4], 1
    %873 = vsyncpa [#allocation6], 1

</llo_original>
